<compile_context>
chip_gen: v5e
topology: v5e:2x2
jax: 0.10.0
libtpu: 0.0.40
codegen_flags: <defaults>
</compile_context>

<pallas_src>
from functools import partial

import jax
import jax.numpy as jnp
import numpy as np
from jax.experimental import pallas as pl
from jax.experimental.pallas import tpu as pltpu


def _ceil_to(x, m):
    return ((x + m - 1) // m) * m


# ----------------------------------------------------------------------------
# Pallas kernel: full LSTM rollout + final linear projection (all VMEM resident)
# ----------------------------------------------------------------------------
def decoder_kernel(x_ref,       # (T*Bp, 2)      f32  flattened trajectory (batch-padded)
                   w_ih_ref,    # (2, 4*Hp)      f32  input weights^T, [i,f,o,g], 128-lane gate blocks
                   w_hh_ref,    # (Hp, 4*Hp)     f32  recurrent weights^T, same layout
                   b_ref,       # (1, 4*Hp)      f32  b_ih + b_hh, same layout
                   w_lin_ref,   # (Hp, OUT_PAD)  f32  Linear weight^T (row/lane padded)
                   b_lin_ref,   # (1, OUT_PAD)   f32  Linear bias (lane padded)
                   out_ref,     # (Bp, OUT_PAD)  f32  Linear(final hidden state)
                   gx_ref):     # (T*Bp, 4*Hp)   f32  VMEM scratch: hoisted input projection
    Hp = w_hh_ref.shape[0]
    Bp = out_ref.shape[0]
    T = x_ref.shape[0] // Bp

    # ---- Hoisted input projection: one shot for all T steps, off the serial
    #      chain, f32 end-to-end (K=2, the MXU cost is irrelevant here).
    #      Staged in VMEM scratch so the unrolled loop reloads a small
    #      (Bp, 4*Hp) slice per step instead of holding 32 vregs live.
    gx_ref[...] = (jnp.dot(x_ref[...], w_ih_ref[...],
                           preferred_element_type=jnp.float32)
                   + b_ref[...])

    # ---- Serial recurrence, fully unrolled (T is a static Python int).
    #      h and c are each exactly one f32 vreg (Bp=8 sublanes x Hp=128 lanes).
    h = jnp.zeros((Bp, Hp), jnp.float32)
    c = jnp.zeros((Bp, Hp), jnp.float32)
    for t in range(T):
        gates = (gx_ref[pl.ds(t * Bp, Bp), :]
                 + jnp.dot(h, w_hh_ref[...],
                           preferred_element_type=jnp.float32))   # (Bp, 4*Hp)
        # Gate blocks are 128-lane aligned: every slice below is vreg-aligned,
        # no cross-lane rotations on the dependency chain.
        sig = jax.nn.sigmoid(gates[:, :3 * Hp])       # i | f | o slab, one EUP dispatch
        i_g = sig[:, 0 * Hp:1 * Hp]
        f_g = sig[:, 1 * Hp:2 * Hp]
        o_g = sig[:, 2 * Hp:3 * Hp]
        g_g = jnp.tanh(gates[:, 3 * Hp:4 * Hp])
        c = f_g * c + i_g * g_g
        h = o_g * jnp.tanh(c)

    # ---- final_hh = Linear(final_h): lane-dense (Bp, OUT_PAD) full-ref store.
    out_ref[...] = (jnp.dot(h, w_lin_ref[...], preferred_element_type=jnp.float32)
                    + b_lin_ref[...])


# ----------------------------------------------------------------------------
# One-time, host-side (numpy) weight preparation — NOT on the per-call path.
# ----------------------------------------------------------------------------
def prepare_decoder_params(params, seq_len):
    """Reorder gates [i,f,g,o] -> [i,f,o,g], transpose, and pad every gate
    block (and the Linear head) to 128 lanes.  Returns a dict of jnp arrays."""
    w_ih = np.asarray(params["w_ih"], np.float32)    # (4H, 2)
    w_hh = np.asarray(params["w_hh"], np.float32)    # (4H, H)
    b_ih = np.asarray(params["b_ih"], np.float32)    # (4H,)
    b_hh = np.asarray(params["b_hh"], np.float32)    # (4H,)
    w_lin = np.asarray(params["w_lin"], np.float32)  # (2*seq_len, H)
    b_lin = np.asarray(params["b_lin"], np.float32)  # (2*seq_len,)

    H = w_hh.shape[1]
    Hp = _ceil_to(H, 128)                 # 128-lane gate blocks (vreg aligned)
    OUT = 2 * seq_len
    OUT_PAD = _ceil_to(OUT, 128)          # lane-dense output store

    # PyTorch block order is [i, f, g, o]; destination order is [i, f, o, g]
    # so one contiguous sigmoid slab ([:, :3*Hp]) + one tanh slab ([:, 3*Hp:]).
    src_order = (0, 1, 3, 2)

    w_ih_t = np.zeros((2, 4 * Hp), np.float32)
    w_hh_t = np.zeros((Hp, 4 * Hp), np.float32)
    b = np.zeros((1, 4 * Hp), np.float32)
    for dst, src in enumerate(src_order):
        w_ih_t[:, dst * Hp:dst * Hp + H] = w_ih[src * H:(src + 1) * H, :].T
        w_hh_t[:H, dst * Hp:dst * Hp + H] = w_hh[src * H:(src + 1) * H, :].T
        b[0, dst * Hp:dst * Hp + H] = (b_ih[src * H:(src + 1) * H]
                                       + b_hh[src * H:(src + 1) * H])

    w_lin_t = np.zeros((Hp, OUT_PAD), np.float32)
    w_lin_t[:H, :OUT] = w_lin.T
    b_lin_p = np.zeros((1, OUT_PAD), np.float32)
    b_lin_p[0, :OUT] = b_lin

    return {
        "w_ih_t": jnp.asarray(w_ih_t),
        "w_hh_t": jnp.asarray(w_hh_t),
        "b": jnp.asarray(b),
        "w_lin_t": jnp.asarray(w_lin_t),
        "b_lin": jnp.asarray(b_lin_p),
    }


# ----------------------------------------------------------------------------
# Jitted forward: pad activation, run the kernel, strip padding, final permute.
# ----------------------------------------------------------------------------
@partial(jax.jit, static_argnames=("seq_len",))
def decoder_forward(obs_traj, prepped, seq_len):
    """obs_traj: (T, B, 2) float32 -> (seq_len, B, 2) float32."""
    T, B, _ = obs_traj.shape
    Hp = prepped["w_hh_t"].shape[0]
    OUT_PAD = prepped["w_lin_t"].shape[1]
    OUT = 2 * seq_len
    Bp = _ceil_to(B, 8)                       # full sublane occupancy

    x = jnp.pad(obs_traj.astype(jnp.float32), ((0, 0), (0, Bp - B), (0, 0)))
    x_flat = x.reshape(T * Bp, 2)

    vmem = pl.BlockSpec(memory_space=pltpu.MemorySpace.VMEM)
    out_pad = pl.pallas_call(
        decoder_kernel,
        out_shape=jax.ShapeDtypeStruct((Bp, OUT_PAD), jnp.float32),
        in_specs=[vmem] * 6,
        out_specs=vmem,
        scratch_shapes=[pltpu.VMEM((T * Bp, 4 * Hp), jnp.float32)],
    )(x_flat, prepped["w_ih_t"], prepped["w_hh_t"], prepped["b"],
      prepped["w_lin_t"], prepped["b_lin"])

    out = out_pad[:B, :OUT]                   # drop batch/lane padding
    # (B, 2*seq_len) -> (B, seq_len, 2) -> permute(1, 0, 2) -> (seq_len, B, 2)
    return jnp.transpose(out.reshape(B, seq_len, 2), (1, 0, 2))


# ----------------------------------------------------------------------------
# Pure-JAX reference (for correctness check), f32 end-to-end
# ----------------------------------------------------------------------------
def decoder_reference(obs_traj, params, seq_len):
    T, B, _ = obs_traj.shape
    H = params["w_hh"].shape[1]
    h = jnp.zeros((B, H), jnp.float32)
    c = jnp.zeros((B, H), jnp.float32)
    for t in range(T):
        gates = (obs_traj[t] @ params["w_ih"].T + params["b_ih"]
                 + h @ params["w_hh"].T + params["b_hh"])
        i_g = jax.nn.sigmoid(gates[:, 0 * H:1 * H])
        f_g = jax.nn.sigmoid(gates[:, 1 * H:2 * H])
        g_g = jnp.tanh(gates[:, 2 * H:3 * H])
        o_g = jax.nn.sigmoid(gates[:, 3 * H:4 * H])
        c = f_g * c + i_g * g_g
        h = o_g * jnp.tanh(c)
    out = h @ params["w_lin"].T + params["b_lin"]
    return jnp.transpose(out.reshape(B, seq_len, 2), (1, 0, 2))


# ----------------------------------------------------------------------------
# Main
# ----------------------------------------------------------------------------
if __name__ == "__main__":
    seq_len = 8
    h_dim = 64
    batch = 4
    T_in = seq_len          # obs_traj length

    key = jax.random.PRNGKey(0)
    k_x, k1, k2, k3, k4, k5, k6 = jax.random.split(key, 7)

    # Deterministic parameter init, matching PyTorch LSTM/Linear init scale.
    bound = 1.0 / np.sqrt(h_dim)
    params = {
        # nn.LSTM(2, h_dim): weight_ih_l0 (4H, 2), weight_hh_l0 (4H, H), biases (4H,)
        "w_ih": jax.random.uniform(k1, (4 * h_dim, 2), jnp.float32, -bound, bound),
        "w_hh": jax.random.uniform(k2, (4 * h_dim, h_dim), jnp.float32, -bound, bound),
        "b_ih": jax.random.uniform(k3, (4 * h_dim,), jnp.float32, -bound, bound),
        "b_hh": jax.random.uniform(k4, (4 * h_dim,), jnp.float32, -bound, bound),
        # nn.Linear(h_dim, 2*seq_len)
        "w_lin": jax.random.uniform(k5, (2 * seq_len, h_dim), jnp.float32, -bound, bound),
        "b_lin": jax.random.uniform(k6, (2 * seq_len,), jnp.float32, -bound, bound),
    }

    obs_traj = jax.random.normal(k_x, (T_in, batch, 2), jnp.float32)

    # One-time weight prep (host side), then the jitted forward.
    prepped = prepare_decoder_params(params, seq_len)
    out = decoder_forward(obs_traj, prepped, seq_len=seq_len)
    out = jax.block_until_ready(out)

    ref = decoder_reference(obs_traj, params, seq_len)
    assert out.shape == (seq_len, batch, 2), out.shape
    # Tighter than the bf16 version (all matmuls are now f32 with f32 accumulate);
    # kept with margin in case the MXU runs f32 at reduced internal precision.
    np.testing.assert_allclose(np.asarray(out), np.asarray(ref), rtol=2e-2, atol=1e-2)

    print("KERNEL_OK")
</pallas_src>

<mosaic_0001>
module attributes {stable_mosaic.version = 11 : i64} {
  func.func @decoder_kernel(%arg0: memref<64x2xf32, #tpu.memory_space<vmem>>, %arg1: memref<2x512xf32, #tpu.memory_space<vmem>>, %arg2: memref<128x512xf32, #tpu.memory_space<vmem>>, %arg3: memref<1x512xf32, #tpu.memory_space<vmem>>, %arg4: memref<128x128xf32, #tpu.memory_space<vmem>>, %arg5: memref<1x128xf32, #tpu.memory_space<vmem>>, %arg6: memref<8x128xf32, #tpu.memory_space<vmem>>, %arg7: memref<64x512xf32, #tpu.memory_space<vmem>>) attributes {dimension_semantics = [], scalar_prefetch = 0 : i64, scratch_operands = 1 : i64, tpu.core_type = #tpu.core_type<tc>} {
    %c0 = arith.constant 0 : index
    %c0_0 = arith.constant 0 : index
    %0 = vector.load %arg0[%c0, %c0_0] : memref<64x2xf32, #tpu.memory_space<vmem>>, vector<64x2xf32>
    %c0_1 = arith.constant 0 : index
    %c0_2 = arith.constant 0 : index
    %1 = vector.load %arg1[%c0_1, %c0_2] : memref<2x512xf32, #tpu.memory_space<vmem>>, vector<2x512xf32>
    %cst = arith.constant dense<0.000000e+00> : vector<64x512xf32>
    %2 = tpu.matmul %0, %1, %cst {dimension_numbers = #tpu.dot_dimension_numbers<[1], [0], [0], [1], [0, 0, 1, 1], [], []>} : vector<64x2xf32>, vector<2x512xf32>, vector<64x512xf32> -> vector<64x512xf32>
    %c0_3 = arith.constant 0 : index
    %c0_4 = arith.constant 0 : index
    %3 = vector.load %arg3[%c0_3, %c0_4] : memref<1x512xf32, #tpu.memory_space<vmem>>, vector<1x512xf32>
    %4 = vector.broadcast %3 : vector<1x512xf32> to vector<64x512xf32>
    %5 = arith.addf %2, %4 : vector<64x512xf32>
    %c0_5 = arith.constant 0 : index
    %c0_6 = arith.constant 0 : index
    %6 = vector.load %arg7[%c0_5, %c0_6] : memref<64x512xf32, #tpu.memory_space<vmem>>, vector<64x512xf32>
    tpu.vector_store %arg7[%c0_5, %c0_6], %5 {strides = array<i32>} : memref<64x512xf32, #tpu.memory_space<vmem>>, vector<64x512xf32>,
    %cst_7 = arith.constant 0.000000e+00 : f32
    %7 = vector.broadcast %cst_7 : f32 to vector<8x128xf32>
    %cst_8 = arith.constant 0.000000e+00 : f32
    %8 = vector.broadcast %cst_8 : f32 to vector<8x128xf32>
    %c0_9 = arith.constant 0 : index
    %c0_10 = arith.constant 0 : index
    %9 = vector.load %arg7[%c0_9, %c0_10] : memref<64x512xf32, #tpu.memory_space<vmem>>, vector<8x512xf32>
    %c0_11 = arith.constant 0 : index
    %c0_12 = arith.constant 0 : index
    %10 = vector.load %arg2[%c0_11, %c0_12] : memref<128x512xf32, #tpu.memory_space<vmem>>, vector<128x512xf32>
    %cst_13 = arith.constant dense<0.000000e+00> : vector<8x512xf32>
    %11 = tpu.matmul %7, %10, %cst_13 {dimension_numbers = #tpu.dot_dimension_numbers<[1], [0], [0], [1], [0, 0, 1, 1], [], []>} : vector<8x128xf32>, vector<128x512xf32>, vector<8x512xf32> -> vector<8x512xf32>
    %12 = arith.addf %9, %11 : vector<8x512xf32>
    %13 = vector.extract_strided_slice %12 {offsets = [0, 0], sizes = [8, 384], strides = [1, 1]} : vector<8x512xf32> to vector<8x384xf32>
    %14 = arith.negf %13 : vector<8x384xf32>
    %15 = math.exp %14 : vector<8x384xf32>
    %cst_14 = arith.constant 1.000000e+00 : f32
    %16 = vector.broadcast %cst_14 : f32 to vector<8x384xf32>
    %17 = arith.addf %16, %15 : vector<8x384xf32>
    %18 = arith.divf %16, %17 : vector<8x384xf32>
    %19 = vector.extract_strided_slice %18 {offsets = [0, 0], sizes = [8, 128], strides = [1, 1]} : vector<8x384xf32> to vector<8x128xf32>
    %20 = vector.extract_strided_slice %18 {offsets = [0, 128], sizes = [8, 128], strides = [1, 1]} : vector<8x384xf32> to vector<8x128xf32>
    %21 = vector.extract_strided_slice %18 {offsets = [0, 256], sizes = [8, 128], strides = [1, 1]} : vector<8x384xf32> to vector<8x128xf32>
    %22 = vector.extract_strided_slice %12 {offsets = [0, 384], sizes = [8, 128], strides = [1, 1]} : vector<8x512xf32> to vector<8x128xf32>
    %23 = math.tanh %22 : vector<8x128xf32>
    %24 = arith.mulf %20, %8 : vector<8x128xf32>
    %25 = arith.mulf %19, %23 : vector<8x128xf32>
    %26 = arith.addf %24, %25 : vector<8x128xf32>
    %27 = math.tanh %26 : vector<8x128xf32>
    %28 = arith.mulf %21, %27 : vector<8x128xf32>
    %c8 = arith.constant 8 : index
    %c0_15 = arith.constant 0 : index
    %29 = vector.load %arg7[%c8, %c0_15] : memref<64x512xf32, #tpu.memory_space<vmem>>, vector<8x512xf32>
    %c0_16 = arith.constant 0 : index
    %c0_17 = arith.constant 0 : index
    %30 = vector.load %arg2[%c0_16, %c0_17] : memref<128x512xf32, #tpu.memory_space<vmem>>, vector<128x512xf32>
    %cst_18 = arith.constant dense<0.000000e+00> : vector<8x512xf32>
    %31 = tpu.matmul %28, %30, %cst_18 {dimension_numbers = #tpu.dot_dimension_numbers<[1], [0], [0], [1], [0, 0, 1, 1], [], []>} : vector<8x128xf32>, vector<128x512xf32>, vector<8x512xf32> -> vector<8x512xf32>
    %32 = arith.addf %29, %31 : vector<8x512xf32>
    %33 = vector.extract_strided_slice %32 {offsets = [0, 0], sizes = [8, 384], strides = [1, 1]} : vector<8x512xf32> to vector<8x384xf32>
    %34 = arith.negf %33 : vector<8x384xf32>
    %35 = math.exp %34 : vector<8x384xf32>
    %cst_19 = arith.constant 1.000000e+00 : f32
    %36 = vector.broadcast %cst_19 : f32 to vector<8x384xf32>
    %37 = arith.addf %36, %35 : vector<8x384xf32>
    %38 = arith.divf %36, %37 : vector<8x384xf32>
    %39 = vector.extract_strided_slice %38 {offsets = [0, 0], sizes = [8, 128], strides = [1, 1]} : vector<8x384xf32> to vector<8x128xf32>
    %40 = vector.extract_strided_slice %38 {offsets = [0, 128], sizes = [8, 128], strides = [1, 1]} : vector<8x384xf32> to vector<8x128xf32>
    %41 = vector.extract_strided_slice %38 {offsets = [0, 256], sizes = [8, 128], strides = [1, 1]} : vector<8x384xf32> to vector<8x128xf32>
    %42 = vector.extract_strided_slice %32 {offsets = [0, 384], sizes = [8, 128], strides = [1, 1]} : vector<8x512xf32> to vector<8x128xf32>
    %43 = math.tanh %42 : vector<8x128xf32>
    %44 = arith.mulf %40, %26 : vector<8x128xf32>
    %45 = arith.mulf %39, %43 : vector<8x128xf32>
    %46 = arith.addf %44, %45 : vector<8x128xf32>
    %47 = math.tanh %46 : vector<8x128xf32>
    %48 = arith.mulf %41, %47 : vector<8x128xf32>
    %c16 = arith.constant 16 : index
    %c0_20 = arith.constant 0 : index
    %49 = vector.load %arg7[%c16, %c0_20] : memref<64x512xf32, #tpu.memory_space<vmem>>, vector<8x512xf32>
    %c0_21 = arith.constant 0 : index
    %c0_22 = arith.constant 0 : index
    %50 = vector.load %arg2[%c0_21, %c0_22] : memref<128x512xf32, #tpu.memory_space<vmem>>, vector<128x512xf32>
    %cst_23 = arith.constant dense<0.000000e+00> : vector<8x512xf32>
    %51 = tpu.matmul %48, %50, %cst_23 {dimension_numbers = #tpu.dot_dimension_numbers<[1], [0], [0], [1], [0, 0, 1, 1], [], []>} : vector<8x128xf32>, vector<128x512xf32>, vector<8x512xf32> -> vector<8x512xf32>
    %52 = arith.addf %49, %51 : vector<8x512xf32>
    %53 = vector.extract_strided_slice %52 {offsets = [0, 0], sizes = [8, 384], strides = [1, 1]} : vector<8x512xf32> to vector<8x384xf32>
    %54 = arith.negf %53 : vector<8x384xf32>
    %55 = math.exp %54 : vector<8x384xf32>
    %cst_24 = arith.constant 1.000000e+00 : f32
    %56 = vector.broadcast %cst_24 : f32 to vector<8x384xf32>
    %57 = arith.addf %56, %55 : vector<8x384xf32>
    %58 = arith.divf %56, %57 : vector<8x384xf32>
    %59 = vector.extract_strided_slice %58 {offsets = [0, 0], sizes = [8, 128], strides = [1, 1]} : vector<8x384xf32> to vector<8x128xf32>
    %60 = vector.extract_strided_slice %58 {offsets = [0, 128], sizes = [8, 128], strides = [1, 1]} : vector<8x384xf32> to vector<8x128xf32>
    %61 = vector.extract_strided_slice %58 {offsets = [0, 256], sizes = [8, 128], strides = [1, 1]} : vector<8x384xf32> to vector<8x128xf32>
    %62 = vector.extract_strided_slice %52 {offsets = [0, 384], sizes = [8, 128], strides = [1, 1]} : vector<8x512xf32> to vector<8x128xf32>
    %63 = math.tanh %62 : vector<8x128xf32>
    %64 = arith.mulf %60, %46 : vector<8x128xf32>
    %65 = arith.mulf %59, %63 : vector<8x128xf32>
    %66 = arith.addf %64, %65 : vector<8x128xf32>
    %67 = math.tanh %66 : vector<8x128xf32>
    %68 = arith.mulf %61, %67 : vector<8x128xf32>
    %c24 = arith.constant 24 : index
    %c0_25 = arith.constant 0 : index
    %69 = vector.load %arg7[%c24, %c0_25] : memref<64x512xf32, #tpu.memory_space<vmem>>, vector<8x512xf32>
    %c0_26 = arith.constant 0 : index
    %c0_27 = arith.constant 0 : index
    %70 = vector.load %arg2[%c0_26, %c0_27] : memref<128x512xf32, #tpu.memory_space<vmem>>, vector<128x512xf32>
    %cst_28 = arith.constant dense<0.000000e+00> : vector<8x512xf32>
    %71 = tpu.matmul %68, %70, %cst_28 {dimension_numbers = #tpu.dot_dimension_numbers<[1], [0], [0], [1], [0, 0, 1, 1], [], []>} : vector<8x128xf32>, vector<128x512xf32>, vector<8x512xf32> -> vector<8x512xf32>
    %72 = arith.addf %69, %71 : vector<8x512xf32>
    %73 = vector.extract_strided_slice %72 {offsets = [0, 0], sizes = [8, 384], strides = [1, 1]} : vector<8x512xf32> to vector<8x384xf32>
    %74 = arith.negf %73 : vector<8x384xf32>
    %75 = math.exp %74 : vector<8x384xf32>
    %cst_29 = arith.constant 1.000000e+00 : f32
    %76 = vector.broadcast %cst_29 : f32 to vector<8x384xf32>
    %77 = arith.addf %76, %75 : vector<8x384xf32>
    %78 = arith.divf %76, %77 : vector<8x384xf32>
    %79 = vector.extract_strided_slice %78 {offsets = [0, 0], sizes = [8, 128], strides = [1, 1]} : vector<8x384xf32> to vector<8x128xf32>
    %80 = vector.extract_strided_slice %78 {offsets = [0, 128], sizes = [8, 128], strides = [1, 1]} : vector<8x384xf32> to vector<8x128xf32>
    %81 = vector.extract_strided_slice %78 {offsets = [0, 256], sizes = [8, 128], strides = [1, 1]} : vector<8x384xf32> to vector<8x128xf32>
    %82 = vector.extract_strided_slice %72 {offsets = [0, 384], sizes = [8, 128], strides = [1, 1]} : vector<8x512xf32> to vector<8x128xf32>
    %83 = math.tanh %82 : vector<8x128xf32>
    %84 = arith.mulf %80, %66 : vector<8x128xf32>
    %85 = arith.mulf %79, %83 : vector<8x128xf32>
    %86 = arith.addf %84, %85 : vector<8x128xf32>
    %87 = math.tanh %86 : vector<8x128xf32>
    %88 = arith.mulf %81, %87 : vector<8x128xf32>
    %c32 = arith.constant 32 : index
    %c0_30 = arith.constant 0 : index
    %89 = vector.load %arg7[%c32, %c0_30] : memref<64x512xf32, #tpu.memory_space<vmem>>, vector<8x512xf32>
    %c0_31 = arith.constant 0 : index
    %c0_32 = arith.constant 0 : index
    %90 = vector.load %arg2[%c0_31, %c0_32] : memref<128x512xf32, #tpu.memory_space<vmem>>, vector<128x512xf32>
    %cst_33 = arith.constant dense<0.000000e+00> : vector<8x512xf32>
    %91 = tpu.matmul %88, %90, %cst_33 {dimension_numbers = #tpu.dot_dimension_numbers<[1], [0], [0], [1], [0, 0, 1, 1], [], []>} : vector<8x128xf32>, vector<128x512xf32>, vector<8x512xf32> -> vector<8x512xf32>
    %92 = arith.addf %89, %91 : vector<8x512xf32>
    %93 = vector.extract_strided_slice %92 {offsets = [0, 0], sizes = [8, 384], strides = [1, 1]} : vector<8x512xf32> to vector<8x384xf32>
    %94 = arith.negf %93 : vector<8x384xf32>
    %95 = math.exp %94 : vector<8x384xf32>
    %cst_34 = arith.constant 1.000000e+00 : f32
    %96 = vector.broadcast %cst_34 : f32 to vector<8x384xf32>
    %97 = arith.addf %96, %95 : vector<8x384xf32>
    %98 = arith.divf %96, %97 : vector<8x384xf32>
    %99 = vector.extract_strided_slice %98 {offsets = [0, 0], sizes = [8, 128], strides = [1, 1]} : vector<8x384xf32> to vector<8x128xf32>
    %100 = vector.extract_strided_slice %98 {offsets = [0, 128], sizes = [8, 128], strides = [1, 1]} : vector<8x384xf32> to vector<8x128xf32>
    %101 = vector.extract_strided_slice %98 {offsets = [0, 256], sizes = [8, 128], strides = [1, 1]} : vector<8x384xf32> to vector<8x128xf32>
    %102 = vector.extract_strided_slice %92 {offsets = [0, 384], sizes = [8, 128], strides = [1, 1]} : vector<8x512xf32> to vector<8x128xf32>
    %103 = math.tanh %102 : vector<8x128xf32>
    %104 = arith.mulf %100, %86 : vector<8x128xf32>
    %105 = arith.mulf %99, %103 : vector<8x128xf32>
    %106 = arith.addf %104, %105 : vector<8x128xf32>
    %107 = math.tanh %106 : vector<8x128xf32>
    %108 = arith.mulf %101, %107 : vector<8x128xf32>
    %c40 = arith.constant 40 : index
    %c0_35 = arith.constant 0 : index
    %109 = vector.load %arg7[%c40, %c0_35] : memref<64x512xf32, #tpu.memory_space<vmem>>, vector<8x512xf32>
    %c0_36 = arith.constant 0 : index
    %c0_37 = arith.constant 0 : index
    %110 = vector.load %arg2[%c0_36, %c0_37] : memref<128x512xf32, #tpu.memory_space<vmem>>, vector<128x512xf32>
    %cst_38 = arith.constant dense<0.000000e+00> : vector<8x512xf32>
    %111 = tpu.matmul %108, %110, %cst_38 {dimension_numbers = #tpu.dot_dimension_numbers<[1], [0], [0], [1], [0, 0, 1, 1], [], []>} : vector<8x128xf32>, vector<128x512xf32>, vector<8x512xf32> -> vector<8x512xf32>
    %112 = arith.addf %109, %111 : vector<8x512xf32>
    %113 = vector.extract_strided_slice %112 {offsets = [0, 0], sizes = [8, 384], strides = [1, 1]} : vector<8x512xf32> to vector<8x384xf32>
    %114 = arith.negf %113 : vector<8x384xf32>
    %115 = math.exp %114 : vector<8x384xf32>
    %cst_39 = arith.constant 1.000000e+00 : f32
    %116 = vector.broadcast %cst_39 : f32 to vector<8x384xf32>
    %117 = arith.addf %116, %115 : vector<8x384xf32>
    %118 = arith.divf %116, %117 : vector<8x384xf32>
    %119 = vector.extract_strided_slice %118 {offsets = [0, 0], sizes = [8, 128], strides = [1, 1]} : vector<8x384xf32> to vector<8x128xf32>
    %120 = vector.extract_strided_slice %118 {offsets = [0, 128], sizes = [8, 128], strides = [1, 1]} : vector<8x384xf32> to vector<8x128xf32>
    %121 = vector.extract_strided_slice %118 {offsets = [0, 256], sizes = [8, 128], strides = [1, 1]} : vector<8x384xf32> to vector<8x128xf32>
    %122 = vector.extract_strided_slice %112 {offsets = [0, 384], sizes = [8, 128], strides = [1, 1]} : vector<8x512xf32> to vector<8x128xf32>
    %123 = math.tanh %122 : vector<8x128xf32>
    %124 = arith.mulf %120, %106 : vector<8x128xf32>
    %125 = arith.mulf %119, %123 : vector<8x128xf32>
    %126 = arith.addf %124, %125 : vector<8x128xf32>
    %127 = math.tanh %126 : vector<8x128xf32>
    %128 = arith.mulf %121, %127 : vector<8x128xf32>
    %c48 = arith.constant 48 : index
    %c0_40 = arith.constant 0 : index
    %129 = vector.load %arg7[%c48, %c0_40] : memref<64x512xf32, #tpu.memory_space<vmem>>, vector<8x512xf32>
    %c0_41 = arith.constant 0 : index
    %c0_42 = arith.constant 0 : index
    %130 = vector.load %arg2[%c0_41, %c0_42] : memref<128x512xf32, #tpu.memory_space<vmem>>, vector<128x512xf32>
    %cst_43 = arith.constant dense<0.000000e+00> : vector<8x512xf32>
    %131 = tpu.matmul %128, %130, %cst_43 {dimension_numbers = #tpu.dot_dimension_numbers<[1], [0], [0], [1], [0, 0, 1, 1], [], []>} : vector<8x128xf32>, vector<128x512xf32>, vector<8x512xf32> -> vector<8x512xf32>
    %132 = arith.addf %129, %131 : vector<8x512xf32>
    %133 = vector.extract_strided_slice %132 {offsets = [0, 0], sizes = [8, 384], strides = [1, 1]} : vector<8x512xf32> to vector<8x384xf32>
    %134 = arith.negf %133 : vector<8x384xf32>
    %135 = math.exp %134 : vector<8x384xf32>
    %cst_44 = arith.constant 1.000000e+00 : f32
    %136 = vector.broadcast %cst_44 : f32 to vector<8x384xf32>
    %137 = arith.addf %136, %135 : vector<8x384xf32>
    %138 = arith.divf %136, %137 : vector<8x384xf32>
    %139 = vector.extract_strided_slice %138 {offsets = [0, 0], sizes = [8, 128], strides = [1, 1]} : vector<8x384xf32> to vector<8x128xf32>
    %140 = vector.extract_strided_slice %138 {offsets = [0, 128], sizes = [8, 128], strides = [1, 1]} : vector<8x384xf32> to vector<8x128xf32>
    %141 = vector.extract_strided_slice %138 {offsets = [0, 256], sizes = [8, 128], strides = [1, 1]} : vector<8x384xf32> to vector<8x128xf32>
    %142 = vector.extract_strided_slice %132 {offsets = [0, 384], sizes = [8, 128], strides = [1, 1]} : vector<8x512xf32> to vector<8x128xf32>
    %143 = math.tanh %142 : vector<8x128xf32>
    %144 = arith.mulf %140, %126 : vector<8x128xf32>
    %145 = arith.mulf %139, %143 : vector<8x128xf32>
    %146 = arith.addf %144, %145 : vector<8x128xf32>
    %147 = math.tanh %146 : vector<8x128xf32>
    %148 = arith.mulf %141, %147 : vector<8x128xf32>
    %c56 = arith.constant 56 : index
    %c0_45 = arith.constant 0 : index
    %149 = vector.load %arg7[%c56, %c0_45] : memref<64x512xf32, #tpu.memory_space<vmem>>, vector<8x512xf32>
    %c0_46 = arith.constant 0 : index
    %c0_47 = arith.constant 0 : index
    %150 = vector.load %arg2[%c0_46, %c0_47] : memref<128x512xf32, #tpu.memory_space<vmem>>, vector<128x512xf32>
    %cst_48 = arith.constant dense<0.000000e+00> : vector<8x512xf32>
    %151 = tpu.matmul %148, %150, %cst_48 {dimension_numbers = #tpu.dot_dimension_numbers<[1], [0], [0], [1], [0, 0, 1, 1], [], []>} : vector<8x128xf32>, vector<128x512xf32>, vector<8x512xf32> -> vector<8x512xf32>
    %152 = arith.addf %149, %151 : vector<8x512xf32>
    %153 = vector.extract_strided_slice %152 {offsets = [0, 0], sizes = [8, 384], strides = [1, 1]} : vector<8x512xf32> to vector<8x384xf32>
    %154 = arith.negf %153 : vector<8x384xf32>
    %155 = math.exp %154 : vector<8x384xf32>
    %cst_49 = arith.constant 1.000000e+00 : f32
    %156 = vector.broadcast %cst_49 : f32 to vector<8x384xf32>
    %157 = arith.addf %156, %155 : vector<8x384xf32>
    %158 = arith.divf %156, %157 : vector<8x384xf32>
    %159 = vector.extract_strided_slice %158 {offsets = [0, 0], sizes = [8, 128], strides = [1, 1]} : vector<8x384xf32> to vector<8x128xf32>
    %160 = vector.extract_strided_slice %158 {offsets = [0, 128], sizes = [8, 128], strides = [1, 1]} : vector<8x384xf32> to vector<8x128xf32>
    %161 = vector.extract_strided_slice %158 {offsets = [0, 256], sizes = [8, 128], strides = [1, 1]} : vector<8x384xf32> to vector<8x128xf32>
    %162 = vector.extract_strided_slice %152 {offsets = [0, 384], sizes = [8, 128], strides = [1, 1]} : vector<8x512xf32> to vector<8x128xf32>
    %163 = math.tanh %162 : vector<8x128xf32>
    %164 = arith.mulf %160, %146 : vector<8x128xf32>
    %165 = arith.mulf %159, %163 : vector<8x128xf32>
    %166 = arith.addf %164, %165 : vector<8x128xf32>
    %167 = math.tanh %166 : vector<8x128xf32>
    %168 = arith.mulf %161, %167 : vector<8x128xf32>
    %c0_50 = arith.constant 0 : index
    %c0_51 = arith.constant 0 : index
    %169 = vector.load %arg4[%c0_50, %c0_51] : memref<128x128xf32, #tpu.memory_space<vmem>>, vector<128x128xf32>
    %cst_52 = arith.constant dense<0.000000e+00> : vector<8x128xf32>
    %170 = tpu.matmul %168, %169, %cst_52 {dimension_numbers = #tpu.dot_dimension_numbers<[1], [0], [0], [1], [0, 0, 1, 1], [], []>} : vector<8x128xf32>, vector<128x128xf32>, vector<8x128xf32> -> vector<8x128xf32>
    %c0_53 = arith.constant 0 : index
    %c0_54 = arith.constant 0 : index
    %171 = vector.load %arg5[%c0_53, %c0_54] : memref<1x128xf32, #tpu.memory_space<vmem>>, vector<1x128xf32>
    %172 = vector.broadcast %171 : vector<1x128xf32> to vector<8x128xf32>
    %173 = arith.addf %170, %172 : vector<8x128xf32>
    %c0_55 = arith.constant 0 : index
    %c0_56 = arith.constant 0 : index
    %174 = vector.load %arg6[%c0_55, %c0_56] : memref<8x128xf32, #tpu.memory_space<vmem>>, vector<8x128xf32>
    tpu.vector_store %arg6[%c0_55, %c0_56], %173 {strides = array<i32>} : memref<8x128xf32, #tpu.memory_space<vmem>>, vector<8x128xf32>,
    return
  }
}

</mosaic_0001>

<llo_original>
// kernel: decoder_forward.1
$region0: #{decoder_forward.1}
  #allocation0 [shape = 'u32[]', space=smem, size = 0x4, offset = 0x4, fixed_abs, tag = 'smem constant byte address 0x4 - core index']
  #allocation1 [shape = 'u32[72,128]{1,0:T(1,128)}', space=vmem, size = 0x9000, scoped, tag = 'internal scratch']
  #allocation2 [shape = 'f32[64,512]{1,0:T(8,128)}', space=vmem, size = 0x20000, scoped, tag = 'scratch operand']
  %s0 = inlined_call_operand.vmem [shape: f32[64,2], index: 0, kind: input, shape index: {}]
  %s1 = inlined_call_operand.vmem [shape: f32[2,512], index: 1, kind: input, shape index: {}]
  %s2 = inlined_call_operand.hbm [shape: f32[128,512], index: 2, kind: input, shape index: {}]
  %s3 = inlined_call_operand.vmem [shape: f32[1,512], index: 3, kind: input, shape index: {}]
  %s4 = inlined_call_operand.vmem [shape: f32[128,128], index: 4, kind: input, shape index: {}]
  %s5 = inlined_call_operand.hbm [shape: f32[1,128], index: 5, kind: input, shape index: {}]
  %s6 = inlined_call_operand.vmem [shape: f32[8,128], index: 6, kind: output, shape index: {}]
  %s7 = sld [smem:[#allocation0]]
  $region42: #{decoder_forward.1} parent=0
    _
  %s9 = ssub.s32 1, %s7
  %s10 = scalar_select 0, %s9, %s7
  $region1: #{decoder_forward.1} parent=0
    #allocation3 [shape = 'u8[262144]{0}', space=vmem, size = 0x40000, scoped, tag = 'input window, operand 2, single buffered']
    #allocation4 [shape = 's32[1]{0}', space=sflag, size = 0x4, scoped, tag = 'scoped memory for decoder_forward.1']
    #allocation5 [shape = 'u8[512]{0}', space=vmem, size = 0x400, scoped, tag = 'input window, operand 5, single buffered']
    #allocation6 [shape = 's32[1]{0}', space=sflag, size = 0x4, scoped, tag = 'scoped memory for decoder_forward.1']
    %11 = vsyncpa [#allocation4], 0
    %12 = vsyncpa [#allocation6], 0
    // Predicated region
    $region2: #{decoder_forward.1} parent=1 // pred_check
      _
    $region3: #{decoder_forward.1} parent=1 // pred_check_branch
      %14 = sbr.rel (0) target = $region5
    $region4: #{decoder_forward.1} parent=1 // pred_region
      _
    $region5: #{decoder_forward.1} parent=1 // pred_fallthru
      _
    // Predicated region
    $region6: #{decoder_forward.1} parent=1 // pred_check
      _
    $region7: #{decoder_forward.1} parent=1 // pred_check_branch
      %16 = sbr.rel (0) target = $region9
    $region8: #{decoder_forward.1} parent=1 // pred_region
      _
    $region9: #{decoder_forward.1} parent=1 // pred_fallthru
      _
    // Predicated region
    $region10: #{decoder_forward.1} parent=1 // pred_check
      _
    $region11: #{decoder_forward.1} parent=1 // pred_check_branch
      %18 = sbr.rel (0) target = $region13
    $region12: #{decoder_forward.1} parent=1 // pred_region
      %20 = vsyncadd [#allocation4], 0
      %s21 = sshll.u32 %s2, 4
      %s22 = int_to_ptr.hbm [resolvable:$true] %s21
      %s23 = sshll.u32 [#allocation3], 4
      %s24 = int_to_ptr.vmem [resolvable:$true] %s23
      %29 = dma.hbm_to_vmem [thread:$0]  %s22, 8192, %s24, [#allocation4], 512, 512, 32
    $region13: #{decoder_forward.1} parent=1 // pred_fallthru
      _
    // Predicated region
    $region14: #{decoder_forward.1} parent=1 // pred_check
      _
    $region15: #{decoder_forward.1} parent=1 // pred_check_branch
      %31 = sbr.rel (0) target = $region17
    $region16: #{decoder_forward.1} parent=1 // pred_region
      _
    $region17: #{decoder_forward.1} parent=1 // pred_fallthru
      _
    // Predicated region
    $region18: #{decoder_forward.1} parent=1 // pred_check
      _
    $region19: #{decoder_forward.1} parent=1 // pred_check_branch
      %33 = sbr.rel (0) target = $region21
    $region20: #{decoder_forward.1} parent=1 // pred_region
      _
    $region21: #{decoder_forward.1} parent=1 // pred_fallthru
      _
    // Predicated region
    $region22: #{decoder_forward.1} parent=1 // pred_check
      _
    $region23: #{decoder_forward.1} parent=1 // pred_check_branch
      %35 = sbr.rel (0) target = $region25
    $region24: #{decoder_forward.1} parent=1 // pred_region
      %37 = vsyncadd [#allocation6], 0
      %s39 = sshll.u32 %s5, 4
      %s40 = int_to_ptr.hbm [resolvable:$true] %s39
      %s41 = sshll.u32 [#allocation5], 4
      %s42 = int_to_ptr.vmem [resolvable:$true] %s41
      %44 = dma.hbm_to_vmem [thread:$0]  %s40, 16, %s42, [#allocation6]
    $region25: #{decoder_forward.1} parent=1 // pred_fallthru
      _
    // Predicated region
    $region26: #{decoder_forward.1} parent=1 // pred_check
      _
    $region27: #{decoder_forward.1} parent=1 // pred_check_branch
      %46 = sbr.rel (0) target = $region29
    $region28: #{decoder_forward.1} parent=1 // pred_region
      %48 = dma.done [#allocation4], 8192
    $region29: #{decoder_forward.1} parent=1 // pred_fallthru
      _
    // Predicated region
    $region30: #{decoder_forward.1} parent=1 // pred_check
      _
    $region31: #{decoder_forward.1} parent=1 // pred_check_branch
      %50 = sbr.rel (0) target = $region33
    $region32: #{decoder_forward.1} parent=1 // pred_region
      %52 = dma.done [#allocation6], 16
    $region33: #{decoder_forward.1} parent=1 // pred_fallthru
      _
    %v53 = vld [vmem:[%s0] sm:$0xff]
    %v54 = vld [vmem:[%s0 + $0x8] sm:$0xff]
    %v55 = vld [vmem:[%s0 + $0x10] sm:$0xff]
    %v56 = vld [vmem:[%s0 + $0x18] sm:$0xff]
    %v57 = vld [vmem:[%s0 + $0x20] sm:$0xff]
    %v58 = vld [vmem:[%s0 + $0x28] sm:$0xff]
    %v59 = vld [vmem:[%s0 + $0x30] sm:$0xff]
    %v60 = vld [vmem:[%s0 + $0x38] sm:$0xff]
    %v61 = vld [vmem:[%s1] sm:$0xff]
    %v62 = vld [vmem:[%s3] sm:$0xf]
    %v64 = vperm.slane %v62, 0
    %v65 = vperm.slane %v62, 1
    %v66 = vperm.slane %v62, 2
    %v67 = vperm.slane %v62, 3
    %73 = vst [vmem:[#allocation1] ss:$4 sm:$0xff] %v61
    %v74 = vld.sshfl [vmem:[#allocation1] sm:$0xff pattern:$0x73625140]
    %v75 = vld.sshfl [vmem:[#allocation1 + $0x8] sm:$0xff pattern:$0x73625140]
    %v76 = vld.sshfl [vmem:[#allocation1 + $0x10] sm:$0xff pattern:$0x73625140]
    %v77 = vld.sshfl [vmem:[#allocation1 + $0x18] sm:$0xff pattern:$0x73625140]
    %vm78 = vcmask 15360
    %v80 = vsel %vm78, %v53, 0
    %v83 = vsel %vm78, %v54, 0
    %v86 = vsel %vm78, %v55, 0
    %v89 = vsel %vm78, %v56, 0
    %v92 = vsel %vm78, %v57, 0
    %v95 = vsel %vm78, %v58, 0
    %v98 = vsel %vm78, %v59, 0
    %v101 = vsel %vm78, %v60, 0
    %vm103 = vcmask 1041408
    %v104 = vsel %vm103, %v74, 0
    %v106 = vsel %vm103, %v75, 0
    %v108 = vsel %vm103, %v76, 0
    %v110 = vsel %vm103, %v77, 0
    %112 = vmatpush.msra.mxu0 0.0
    %113 = vmatpush.msra.mxu0 0.0
    %114 = vmatpush.msra.mxu0 0.0
    %115 = vmatpush.msra.mxu0 0.0
    %116 = vmatpush.msra.mxu0 0.0
    %117 = vmatpush.msra.mxu0 0.0
    %118 = vmatpush.msra.mxu0 0.0
    %119 = vmatpush.msra.mxu0 0.0
    %120 = vmatpush.msra.mxu0 0.0
    %121 = vmatpush.msra.mxu0 0.0
    %122 = vmatpush.msra.mxu0 0.0
    %123 = vmatpush.msra.mxu0 0.0
    %124 = vmatpush.msra.mxu0 0.0
    %125 = vmatpush.msra.mxu0 0.0
    %126 = vmatpush.msra.mxu0 0.0
    %127 = vmatpush.msra.mxu0 %v104
    %128 = vmatmul.f32.gmra.mxu0 %v80
    %v129 = vpop.f32.mrf.mxu0
    %v130 = vadd.f32 %v64, %v129
    %131 = vmatmul.f32.gmra.mxu0 %v83
    %v132 = vpop.f32.mrf.mxu0
    %v133 = vadd.f32 %v64, %v132
    %134 = vmatmul.f32.gmra.mxu0 %v86
    %v135 = vpop.f32.mrf.mxu0
    %v136 = vadd.f32 %v64, %v135
    %137 = vmatmul.f32.gmra.mxu0 %v89
    %v138 = vpop.f32.mrf.mxu0
    %v139 = vadd.f32 %v64, %v138
    %140 = vmatmul.f32.gmra.mxu0 %v92
    %v141 = vpop.f32.mrf.mxu0
    %v142 = vadd.f32 %v64, %v141
    %143 = vmatmul.f32.gmra.mxu0 %v95
    %v144 = vpop.f32.mrf.mxu0
    %v145 = vadd.f32 %v64, %v144
    %146 = vmatmul.f32.gmra.mxu0 %v98
    %v147 = vpop.f32.mrf.mxu0
    %v148 = vadd.f32 %v64, %v147
    %149 = vmatmul.f32.gmra.mxu0 %v101
    %v150 = vpop.f32.mrf.mxu0
    %v151 = vadd.f32 %v64, %v150
    %152 = vdwg.mxu0
    %153 = vmatpush.msra.mxu0 0.0
    %154 = vmatpush.msra.mxu0 0.0
    %155 = vmatpush.msra.mxu0 0.0
    %156 = vmatpush.msra.mxu0 0.0
    %157 = vmatpush.msra.mxu0 0.0
    %158 = vmatpush.msra.mxu0 0.0
    %159 = vmatpush.msra.mxu0 0.0
    %160 = vmatpush.msra.mxu0 0.0
    %161 = vmatpush.msra.mxu0 0.0
    %162 = vmatpush.msra.mxu0 0.0
    %163 = vmatpush.msra.mxu0 0.0
    %164 = vmatpush.msra.mxu0 0.0
    %165 = vmatpush.msra.mxu0 0.0
    %166 = vmatpush.msra.mxu0 0.0
    %167 = vmatpush.msra.mxu0 0.0
    %168 = vmatpush.msra.mxu0 %v106
    %169 = vmatmul.f32.gmra.mxu0 %v80
    %v170 = vpop.f32.mrf.mxu0
    %v171 = vadd.f32 %v65, %v170
    %172 = vmatmul.f32.gmra.mxu0 %v83
    %v173 = vpop.f32.mrf.mxu0
    %v174 = vadd.f32 %v65, %v173
    %175 = vmatmul.f32.gmra.mxu0 %v86
    %v176 = vpop.f32.mrf.mxu0
    %v177 = vadd.f32 %v65, %v176
    %178 = vmatmul.f32.gmra.mxu0 %v89
    %v179 = vpop.f32.mrf.mxu0
    %v180 = vadd.f32 %v65, %v179
    %181 = vmatmul.f32.gmra.mxu0 %v92
    %v182 = vpop.f32.mrf.mxu0
    %v183 = vadd.f32 %v65, %v182
    %184 = vmatmul.f32.gmra.mxu0 %v95
    %v185 = vpop.f32.mrf.mxu0
    %v186 = vadd.f32 %v65, %v185
    %187 = vmatmul.f32.gmra.mxu0 %v98
    %v188 = vpop.f32.mrf.mxu0
    %v189 = vadd.f32 %v65, %v188
    %190 = vmatmul.f32.gmra.mxu0 %v101
    %v191 = vpop.f32.mrf.mxu0
    %v192 = vadd.f32 %v65, %v191
    %193 = vdwg.mxu0
    %194 = vmatpush.msra.mxu0 0.0
    %195 = vmatpush.msra.mxu0 0.0
    %196 = vmatpush.msra.mxu0 0.0
    %197 = vmatpush.msra.mxu0 0.0
    %198 = vmatpush.msra.mxu0 0.0
    %199 = vmatpush.msra.mxu0 0.0
    %200 = vmatpush.msra.mxu0 0.0
    %201 = vmatpush.msra.mxu0 0.0
    %202 = vmatpush.msra.mxu0 0.0
    %203 = vmatpush.msra.mxu0 0.0
    %204 = vmatpush.msra.mxu0 0.0
    %205 = vmatpush.msra.mxu0 0.0
    %206 = vmatpush.msra.mxu0 0.0
    %207 = vmatpush.msra.mxu0 0.0
    %208 = vmatpush.msra.mxu0 0.0
    %209 = vmatpush.msra.mxu0 %v108
    %210 = vmatmul.f32.gmra.mxu0 %v80
    %v211 = vpop.f32.mrf.mxu0
    %v212 = vadd.f32 %v66, %v211
    %213 = vmatmul.f32.gmra.mxu0 %v83
    %v214 = vpop.f32.mrf.mxu0
    %v215 = vadd.f32 %v66, %v214
    %216 = vmatmul.f32.gmra.mxu0 %v86
    %v217 = vpop.f32.mrf.mxu0
    %v218 = vadd.f32 %v66, %v217
    %219 = vmatmul.f32.gmra.mxu0 %v89
    %v220 = vpop.f32.mrf.mxu0
    %v221 = vadd.f32 %v66, %v220
    %222 = vmatmul.f32.gmra.mxu0 %v92
    %v223 = vpop.f32.mrf.mxu0
    %v224 = vadd.f32 %v66, %v223
    %225 = vmatmul.f32.gmra.mxu0 %v95
    %v226 = vpop.f32.mrf.mxu0
    %v227 = vadd.f32 %v66, %v226
    %228 = vmatmul.f32.gmra.mxu0 %v98
    %v229 = vpop.f32.mrf.mxu0
    %v230 = vadd.f32 %v66, %v229
    %231 = vmatmul.f32.gmra.mxu0 %v101
    %v232 = vpop.f32.mrf.mxu0
    %v233 = vadd.f32 %v66, %v232
    %234 = vdwg.mxu0
    %235 = vmatpush.msra.mxu0 0.0
    %236 = vmatpush.msra.mxu0 0.0
    %237 = vmatpush.msra.mxu0 0.0
    %238 = vmatpush.msra.mxu0 0.0
    %239 = vmatpush.msra.mxu0 0.0
    %240 = vmatpush.msra.mxu0 0.0
    %241 = vmatpush.msra.mxu0 0.0
    %242 = vmatpush.msra.mxu0 0.0
    %243 = vmatpush.msra.mxu0 0.0
    %244 = vmatpush.msra.mxu0 0.0
    %245 = vmatpush.msra.mxu0 0.0
    %246 = vmatpush.msra.mxu0 0.0
    %247 = vmatpush.msra.mxu0 0.0
    %248 = vmatpush.msra.mxu0 0.0
    %249 = vmatpush.msra.mxu0 0.0
    %250 = vmatpush.msra.mxu0 %v110
    %251 = vmatmul.f32.gmra.mxu0 %v80
    %v252 = vpop.f32.mrf.mxu0
    %v253 = vadd.f32 %v67, %v252
    %254 = vmatmul.f32.gmra.mxu0 %v83
    %v255 = vpop.f32.mrf.mxu0
    %v256 = vadd.f32 %v67, %v255
    %257 = vmatmul.f32.gmra.mxu0 %v86
    %v258 = vpop.f32.mrf.mxu0
    %v259 = vadd.f32 %v67, %v258
    %260 = vmatmul.f32.gmra.mxu0 %v89
    %v261 = vpop.f32.mrf.mxu0
    %v262 = vadd.f32 %v67, %v261
    %263 = vmatmul.f32.gmra.mxu0 %v92
    %v264 = vpop.f32.mrf.mxu0
    %v265 = vadd.f32 %v67, %v264
    %266 = vmatmul.f32.gmra.mxu0 %v95
    %v267 = vpop.f32.mrf.mxu0
    %v268 = vadd.f32 %v67, %v267
    %269 = vmatmul.f32.gmra.mxu0 %v98
    %v270 = vpop.f32.mrf.mxu0
    %v271 = vadd.f32 %v67, %v270
    %272 = vmatmul.f32.gmra.mxu0 %v101
    %v273 = vpop.f32.mrf.mxu0
    %v274 = vadd.f32 %v67, %v273
    %275 = vdwg.mxu0
    %276 = vst [vmem:[#allocation2] sm:$0xff] %v130
    %277 = vst [vmem:[#allocation2 + $0x8] sm:$0xff] %v171
    %278 = vst [vmem:[#allocation2 + $0x10] sm:$0xff] %v212
    %279 = vst [vmem:[#allocation2 + $0x18] sm:$0xff] %v253
    %280 = vst [vmem:[#allocation2 + $0x20] sm:$0xff] %v133
    %281 = vst [vmem:[#allocation2 + $0x28] sm:$0xff] %v174
    %282 = vst [vmem:[#allocation2 + $0x30] sm:$0xff] %v215
    %283 = vst [vmem:[#allocation2 + $0x38] sm:$0xff] %v256
    %284 = vst [vmem:[#allocation2 + $0x40] sm:$0xff] %v136
    %285 = vst [vmem:[#allocation2 + $0x48] sm:$0xff] %v177
    %286 = vst [vmem:[#allocation2 + $0x50] sm:$0xff] %v218
    %287 = vst [vmem:[#allocation2 + $0x58] sm:$0xff] %v259
    %288 = vst [vmem:[#allocation2 + $0x60] sm:$0xff] %v139
    %289 = vst [vmem:[#allocation2 + $0x68] sm:$0xff] %v180
    %290 = vst [vmem:[#allocation2 + $0x70] sm:$0xff] %v221
    %291 = vst [vmem:[#allocation2 + $0x78] sm:$0xff] %v262
    %292 = vst [vmem:[#allocation2 + $0x80] sm:$0xff] %v142
    %293 = vst [vmem:[#allocation2 + $0x88] sm:$0xff] %v183
    %294 = vst [vmem:[#allocation2 + $0x90] sm:$0xff] %v224
    %295 = vst [vmem:[#allocation2 + $0x98] sm:$0xff] %v265
    %296 = vst [vmem:[#allocation2 + $0xa0] sm:$0xff] %v145
    %297 = vst [vmem:[#allocation2 + $0xa8] sm:$0xff] %v186
    %298 = vst [vmem:[#allocation2 + $0xb0] sm:$0xff] %v227
    %299 = vst [vmem:[#allocation2 + $0xb8] sm:$0xff] %v268
    %300 = vst [vmem:[#allocation2 + $0xc0] sm:$0xff] %v148
    %301 = vst [vmem:[#allocation2 + $0xc8] sm:$0xff] %v189
    %302 = vst [vmem:[#allocation2 + $0xd0] sm:$0xff] %v230
    %303 = vst [vmem:[#allocation2 + $0xd8] sm:$0xff] %v271
    %304 = vst [vmem:[#allocation2 + $0xe0] sm:$0xff] %v151
    %305 = vst [vmem:[#allocation2 + $0xe8] sm:$0xff] %v192
    %306 = vst [vmem:[#allocation2 + $0xf0] sm:$0xff] %v233
    %307 = vst [vmem:[#allocation2 + $0xf8] sm:$0xff] %v274
    %v308 = vld [vmem:[#allocation2] sm:$0xff]
    %v309 = vld [vmem:[#allocation2 + $0x8] sm:$0xff]
    %v310 = vld [vmem:[#allocation2 + $0x10] sm:$0xff]
    %v311 = vld [vmem:[#allocation2 + $0x18] sm:$0xff]
    %v312 = vld [vmem:[#allocation3] sm:$0xff]
    %v313 = vld [vmem:[#allocation3 + $0x8] sm:$0xff]
    %v314 = vld [vmem:[#allocation3 + $0x10] sm:$0xff]
    %v315 = vld [vmem:[#allocation3 + $0x18] sm:$0xff]
    %v316 = vld [vmem:[#allocation3 + $0x20] sm:$0xff]
    %v317 = vld [vmem:[#allocation3 + $0x28] sm:$0xff]
    %v318 = vld [vmem:[#allocation3 + $0x30] sm:$0xff]
    %v319 = vld [vmem:[#allocation3 + $0x38] sm:$0xff]
    %v320 = vld [vmem:[#allocation3 + $0x40] sm:$0xff]
    %v321 = vld [vmem:[#allocation3 + $0x48] sm:$0xff]
    %v322 = vld [vmem:[#allocation3 + $0x50] sm:$0xff]
    %v323 = vld [vmem:[#allocation3 + $0x58] sm:$0xff]
    %v324 = vld [vmem:[#allocation3 + $0x60] sm:$0xff]
    %v325 = vld [vmem:[#allocation3 + $0x68] sm:$0xff]
    %v326 = vld [vmem:[#allocation3 + $0x70] sm:$0xff]
    %v327 = vld [vmem:[#allocation3 + $0x78] sm:$0xff]
    %v328 = vld [vmem:[#allocation3 + $0x80] sm:$0xff]
    %v329 = vld [vmem:[#allocation3 + $0x88] sm:$0xff]
    %v330 = vld [vmem:[#allocation3 + $0x90] sm:$0xff]
    %v331 = vld [vmem:[#allocation3 + $0x98] sm:$0xff]
    %v332 = vld [vmem:[#allocation3 + $0xa0] sm:$0xff]
    %v333 = vld [vmem:[#allocation3 + $0xa8] sm:$0xff]
    %v334 = vld [vmem:[#allocation3 + $0xb0] sm:$0xff]
    %v335 = vld [vmem:[#allocation3 + $0xb8] sm:$0xff]
    %v336 = vld [vmem:[#allocation3 + $0xc0] sm:$0xff]
    %v337 = vld [vmem:[#allocation3 + $0xc8] sm:$0xff]
    %v338 = vld [vmem:[#allocation3 + $0xd0] sm:$0xff]
    %v339 = vld [vmem:[#allocation3 + $0xd8] sm:$0xff]
    %v340 = vld [vmem:[#allocation3 + $0xe0] sm:$0xff]
    %v341 = vld [vmem:[#allocation3 + $0xe8] sm:$0xff]
    %v342 = vld [vmem:[#allocation3 + $0xf0] sm:$0xff]
    %v343 = vld [vmem:[#allocation3 + $0xf8] sm:$0xff]
    %v344 = vld [vmem:[#allocation3 + $0x100] sm:$0xff]
    %v345 = vld [vmem:[#allocation3 + $0x108] sm:$0xff]
    %v346 = vld [vmem:[#allocation3 + $0x110] sm:$0xff]
    %v347 = vld [vmem:[#allocation3 + $0x118] sm:$0xff]
    %v348 = vld [vmem:[#allocation3 + $0x120] sm:$0xff]
    %v349 = vld [vmem:[#allocation3 + $0x128] sm:$0xff]
    %v350 = vld [vmem:[#allocation3 + $0x130] sm:$0xff]
    %v351 = vld [vmem:[#allocation3 + $0x138] sm:$0xff]
    %v352 = vld [vmem:[#allocation3 + $0x140] sm:$0xff]
    %v353 = vld [vmem:[#allocation3 + $0x148] sm:$0xff]
    %v354 = vld [vmem:[#allocation3 + $0x150] sm:$0xff]
    %v355 = vld [vmem:[#allocation3 + $0x158] sm:$0xff]
    %v356 = vld [vmem:[#allocation3 + $0x160] sm:$0xff]
    %v357 = vld [vmem:[#allocation3 + $0x168] sm:$0xff]
    %v358 = vld [vmem:[#allocation3 + $0x170] sm:$0xff]
    %v359 = vld [vmem:[#allocation3 + $0x178] sm:$0xff]
    %v360 = vld [vmem:[#allocation3 + $0x180] sm:$0xff]
    %v361 = vld [vmem:[#allocation3 + $0x188] sm:$0xff]
    %v362 = vld [vmem:[#allocation3 + $0x190] sm:$0xff]
    %v363 = vld [vmem:[#allocation3 + $0x198] sm:$0xff]
    %v364 = vld [vmem:[#allocation3 + $0x1a0] sm:$0xff]
    %v365 = vld [vmem:[#allocation3 + $0x1a8] sm:$0xff]
    %v366 = vld [vmem:[#allocation3 + $0x1b0] sm:$0xff]
    %v367 = vld [vmem:[#allocation3 + $0x1b8] sm:$0xff]
    %v368 = vld [vmem:[#allocation3 + $0x1c0] sm:$0xff]
    %v369 = vld [vmem:[#allocation3 + $0x1c8] sm:$0xff]
    %v370 = vld [vmem:[#allocation3 + $0x1d0] sm:$0xff]
    %v371 = vld [vmem:[#allocation3 + $0x1d8] sm:$0xff]
    %v372 = vld [vmem:[#allocation3 + $0x1e0] sm:$0xff]
    %v373 = vld [vmem:[#allocation3 + $0x1e8] sm:$0xff]
    %v374 = vld [vmem:[#allocation3 + $0x1f0] sm:$0xff]
    %v375 = vld [vmem:[#allocation3 + $0x1f8] sm:$0xff]
    %376 = vmatpush.msra.mxu0 %v372
    %377 = vmatpush.msra.mxu0 %v368
    %378 = vmatpush.msra.mxu0 %v364
    %379 = vmatpush.msra.mxu0 %v360
    %380 = vmatpush.msra.mxu0 %v356
    %381 = vmatpush.msra.mxu0 %v352
    %382 = vmatpush.msra.mxu0 %v348
    %383 = vmatpush.msra.mxu0 %v344
    %384 = vmatpush.msra.mxu0 %v340
    %385 = vmatpush.msra.mxu0 %v336
    %386 = vmatpush.msra.mxu0 %v332
    %387 = vmatpush.msra.mxu0 %v328
    %388 = vmatpush.msra.mxu0 %v324
    %389 = vmatpush.msra.mxu0 %v320
    %390 = vmatpush.msra.mxu0 %v316
    %391 = vmatpush.msra.mxu0 %v312
    %392 = vmatmul.f32.gmra.mxu0 0.0
    %v393 = vpop.f32.mrf.mxu0
    %v394 = vadd.f32 0.0, %v393
    %395 = vdwg.mxu0
    %396 = vmatpush.msra.mxu0 %v373
    %397 = vmatpush.msra.mxu0 %v369
    %398 = vmatpush.msra.mxu0 %v365
    %399 = vmatpush.msra.mxu0 %v361
    %400 = vmatpush.msra.mxu0 %v357
    %401 = vmatpush.msra.mxu0 %v353
    %402 = vmatpush.msra.mxu0 %v349
    %403 = vmatpush.msra.mxu0 %v345
    %404 = vmatpush.msra.mxu0 %v341
    %405 = vmatpush.msra.mxu0 %v337
    %406 = vmatpush.msra.mxu0 %v333
    %407 = vmatpush.msra.mxu0 %v329
    %408 = vmatpush.msra.mxu0 %v325
    %409 = vmatpush.msra.mxu0 %v321
    %410 = vmatpush.msra.mxu0 %v317
    %411 = vmatpush.msra.mxu0 %v313
    %412 = vmatmul.f32.gmra.mxu0 0.0
    %v413 = vpop.f32.mrf.mxu0
    %v414 = vadd.f32 0.0, %v413
    %415 = vdwg.mxu0
    %416 = vmatpush.msra.mxu0 %v374
    %417 = vmatpush.msra.mxu0 %v370
    %418 = vmatpush.msra.mxu0 %v366
    %419 = vmatpush.msra.mxu0 %v362
    %420 = vmatpush.msra.mxu0 %v358
    %421 = vmatpush.msra.mxu0 %v354
    %422 = vmatpush.msra.mxu0 %v350
    %423 = vmatpush.msra.mxu0 %v346
    %424 = vmatpush.msra.mxu0 %v342
    %425 = vmatpush.msra.mxu0 %v338
    %426 = vmatpush.msra.mxu0 %v334
    %427 = vmatpush.msra.mxu0 %v330
    %428 = vmatpush.msra.mxu0 %v326
    %429 = vmatpush.msra.mxu0 %v322
    %430 = vmatpush.msra.mxu0 %v318
    %431 = vmatpush.msra.mxu0 %v314
    %432 = vmatmul.f32.gmra.mxu0 0.0
    %v433 = vpop.f32.mrf.mxu0
    %v434 = vadd.f32 0.0, %v433
    %435 = vdwg.mxu0
    %436 = vmatpush.msra.mxu0 %v375
    %437 = vmatpush.msra.mxu0 %v371
    %438 = vmatpush.msra.mxu0 %v367
    %439 = vmatpush.msra.mxu0 %v363
    %440 = vmatpush.msra.mxu0 %v359
    %441 = vmatpush.msra.mxu0 %v355
    %442 = vmatpush.msra.mxu0 %v351
    %443 = vmatpush.msra.mxu0 %v347
    %444 = vmatpush.msra.mxu0 %v343
    %445 = vmatpush.msra.mxu0 %v339
    %446 = vmatpush.msra.mxu0 %v335
    %447 = vmatpush.msra.mxu0 %v331
    %448 = vmatpush.msra.mxu0 %v327
    %449 = vmatpush.msra.mxu0 %v323
    %450 = vmatpush.msra.mxu0 %v319
    %451 = vmatpush.msra.mxu0 %v315
    %452 = vmatmul.f32.gmra.mxu0 0.0
    %v453 = vpop.f32.mrf.mxu0
    %v454 = vadd.f32 0.0, %v453
    %455 = vdwg.mxu0
    %v456 = vadd.f32 %v308, %v394
    %v457 = vadd.f32 %v309, %v414
    %v458 = vadd.f32 %v310, %v434
    %v459 = vadd.f32 %v311, %v454
    %v460 = vxor.u32 %v456, 2147483648
    %v461 = vxor.u32 %v457, 2147483648
    %v462 = vxor.u32 %v458, 2147483648
    %v463 = vmul.f32 %v460, 1.442695
    %v464 = vpow.pop %v463
    %v465 = vmul.f32 %v461, 1.442695
    %v466 = vpow.pop %v465
    %v467 = vmul.f32 %v462, 1.442695
    %v468 = vpow.pop %v467
    %v469 = vadd.f32 %v464, 1.0
    %v470 = vadd.f32 %v466, 1.0
    %v471 = vadd.f32 %v468, 1.0
    %v472 = vrcp.pop %v469
    %v473 = vmul.f32 %v469, %v472
    %v474 = vsub.f32 1.0, %v473
    %v475 = vmul.f32 %v472, %v474
    %v476 = vadd.f32 %v472, %v475
    %vm477 = vweird.f32 %v469
    %vm478 = vweird.f32 %v472
    %vm479 = vmor %vm477, %vm478
    %v480 = vsel %vm479, %v472, %v476
    %v481 = vand.u32 2147483647, %v469
    %vm482 = vcmp.eq.f32.partialorder %v481, 8.507059e+37
    %v483 = vand.u32 %v469, 2147483648
    %v484 = vor.u32 1.1754944e-38, %v483
    %v485 = vsel %vm482, %v484, %v480
    %v486 = vmul.f32 1.0, %v485
    %v487 = vrcp.pop %v470
    %v488 = vmul.f32 %v470, %v487
    %v489 = vsub.f32 1.0, %v488
    %v490 = vmul.f32 %v487, %v489
    %v491 = vadd.f32 %v487, %v490
    %vm492 = vweird.f32 %v470
    %vm493 = vweird.f32 %v487
    %vm494 = vmor %vm492, %vm493
    %v495 = vsel %vm494, %v487, %v491
    %v496 = vand.u32 2147483647, %v470
    %vm497 = vcmp.eq.f32.partialorder %v496, 8.507059e+37
    %v498 = vand.u32 %v470, 2147483648
    %v499 = vor.u32 1.1754944e-38, %v498
    %v500 = vsel %vm497, %v499, %v495
    %v501 = vmul.f32 1.0, %v500
    %v502 = vrcp.pop %v471
    %v503 = vmul.f32 %v471, %v502
    %v504 = vsub.f32 1.0, %v503
    %v505 = vmul.f32 %v502, %v504
    %v506 = vadd.f32 %v502, %v505
    %vm507 = vweird.f32 %v471
    %vm508 = vweird.f32 %v502
    %vm509 = vmor %vm507, %vm508
    %v510 = vsel %vm509, %v502, %v506
    %v511 = vand.u32 2147483647, %v471
    %vm512 = vcmp.eq.f32.partialorder %v511, 8.507059e+37
    %v513 = vand.u32 %v471, 2147483648
    %v514 = vor.u32 1.1754944e-38, %v513
    %v515 = vsel %vm512, %v514, %v510
    %v516 = vmul.f32 1.0, %v515
    %v517 = vtanh.pop %v459
    %v518 = vmul.f32 %v501, 0.0
    %v519 = vmul.f32 %v486, %v517
    %v520 = vadd.f32 %v518, %v519
    %v521 = vtanh.pop %v520
    %v522 = vmul.f32 %v516, %v521
    %v523 = vld [vmem:[#allocation2 + $0x20] sm:$0xff]
    %v524 = vld [vmem:[#allocation2 + $0x28] sm:$0xff]
    %v525 = vld [vmem:[#allocation2 + $0x30] sm:$0xff]
    %v526 = vld [vmem:[#allocation2 + $0x38] sm:$0xff]
    %527 = vmatpush.msra.mxu0 %v372
    %528 = vmatpush.msra.mxu0 %v368
    %529 = vmatpush.msra.mxu0 %v364
    %530 = vmatpush.msra.mxu0 %v360
    %531 = vmatpush.msra.mxu0 %v356
    %532 = vmatpush.msra.mxu0 %v352
    %533 = vmatpush.msra.mxu0 %v348
    %534 = vmatpush.msra.mxu0 %v344
    %535 = vmatpush.msra.mxu0 %v340
    %536 = vmatpush.msra.mxu0 %v336
    %537 = vmatpush.msra.mxu0 %v332
    %538 = vmatpush.msra.mxu0 %v328
    %539 = vmatpush.msra.mxu0 %v324
    %540 = vmatpush.msra.mxu0 %v320
    %541 = vmatpush.msra.mxu0 %v316
    %542 = vmatpush.msra.mxu0 %v312
    %543 = vmatmul.f32.gmra.mxu0 %v522
    %v544 = vpop.f32.mrf.mxu0
    %v545 = vadd.f32 0.0, %v544
    %546 = vdwg.mxu0
    %547 = vmatpush.msra.mxu0 %v373
    %548 = vmatpush.msra.mxu0 %v369
    %549 = vmatpush.msra.mxu0 %v365
    %550 = vmatpush.msra.mxu0 %v361
    %551 = vmatpush.msra.mxu0 %v357
    %552 = vmatpush.msra.mxu0 %v353
    %553 = vmatpush.msra.mxu0 %v349
    %554 = vmatpush.msra.mxu0 %v345
    %555 = vmatpush.msra.mxu0 %v341
    %556 = vmatpush.msra.mxu0 %v337
    %557 = vmatpush.msra.mxu0 %v333
    %558 = vmatpush.msra.mxu0 %v329
    %559 = vmatpush.msra.mxu0 %v325
    %560 = vmatpush.msra.mxu0 %v321
    %561 = vmatpush.msra.mxu0 %v317
    %562 = vmatpush.msra.mxu0 %v313
    %563 = vmatmul.f32.gmra.mxu0 %v522
    %v564 = vpop.f32.mrf.mxu0
    %v565 = vadd.f32 0.0, %v564
    %566 = vdwg.mxu0
    %567 = vmatpush.msra.mxu0 %v374
    %568 = vmatpush.msra.mxu0 %v370
    %569 = vmatpush.msra.mxu0 %v366
    %570 = vmatpush.msra.mxu0 %v362
    %571 = vmatpush.msra.mxu0 %v358
    %572 = vmatpush.msra.mxu0 %v354
    %573 = vmatpush.msra.mxu0 %v350
    %574 = vmatpush.msra.mxu0 %v346
    %575 = vmatpush.msra.mxu0 %v342
    %576 = vmatpush.msra.mxu0 %v338
    %577 = vmatpush.msra.mxu0 %v334
    %578 = vmatpush.msra.mxu0 %v330
    %579 = vmatpush.msra.mxu0 %v326
    %580 = vmatpush.msra.mxu0 %v322
    %581 = vmatpush.msra.mxu0 %v318
    %582 = vmatpush.msra.mxu0 %v314
    %583 = vmatmul.f32.gmra.mxu0 %v522
    %v584 = vpop.f32.mrf.mxu0
    %v585 = vadd.f32 0.0, %v584
    %586 = vdwg.mxu0
    %587 = vmatpush.msra.mxu0 %v375
    %588 = vmatpush.msra.mxu0 %v371
    %589 = vmatpush.msra.mxu0 %v367
    %590 = vmatpush.msra.mxu0 %v363
    %591 = vmatpush.msra.mxu0 %v359
    %592 = vmatpush.msra.mxu0 %v355
    %593 = vmatpush.msra.mxu0 %v351
    %594 = vmatpush.msra.mxu0 %v347
    %595 = vmatpush.msra.mxu0 %v343
    %596 = vmatpush.msra.mxu0 %v339
    %597 = vmatpush.msra.mxu0 %v335
    %598 = vmatpush.msra.mxu0 %v331
    %599 = vmatpush.msra.mxu0 %v327
    %600 = vmatpush.msra.mxu0 %v323
    %601 = vmatpush.msra.mxu0 %v319
    %602 = vmatpush.msra.mxu0 %v315
    %603 = vmatmul.f32.gmra.mxu0 %v522
    %v604 = vpop.f32.mrf.mxu0
    %v605 = vadd.f32 0.0, %v604
    %606 = vdwg.mxu0
    %v607 = vadd.f32 %v523, %v545
    %v608 = vadd.f32 %v524, %v565
    %v609 = vadd.f32 %v525, %v585
    %v610 = vadd.f32 %v526, %v605
    %v611 = vxor.u32 %v607, 2147483648
    %v612 = vxor.u32 %v608, 2147483648
    %v613 = vxor.u32 %v609, 2147483648
    %v614 = vmul.f32 %v611, 1.442695
    %v615 = vpow.pop %v614
    %v616 = vmul.f32 %v612, 1.442695
    %v617 = vpow.pop %v616
    %v618 = vmul.f32 %v613, 1.442695
    %v619 = vpow.pop %v618
    %v620 = vadd.f32 %v615, 1.0
    %v621 = vadd.f32 %v617, 1.0
    %v622 = vadd.f32 %v619, 1.0
    %v623 = vrcp.pop %v620
    %v624 = vmul.f32 %v620, %v623
    %v625 = vsub.f32 1.0, %v624
    %v626 = vmul.f32 %v623, %v625
    %v627 = vadd.f32 %v623, %v626
    %vm628 = vweird.f32 %v620
    %vm629 = vweird.f32 %v623
    %vm630 = vmor %vm628, %vm629
    %v631 = vsel %vm630, %v623, %v627
    %v632 = vand.u32 2147483647, %v620
    %vm633 = vcmp.eq.f32.partialorder %v632, 8.507059e+37
    %v634 = vand.u32 %v620, 2147483648
    %v635 = vor.u32 1.1754944e-38, %v634
    %v636 = vsel %vm633, %v635, %v631
    %v637 = vmul.f32 1.0, %v636
    %v638 = vrcp.pop %v621
    %v639 = vmul.f32 %v621, %v638
    %v640 = vsub.f32 1.0, %v639
    %v641 = vmul.f32 %v638, %v640
    %v642 = vadd.f32 %v638, %v641
    %vm643 = vweird.f32 %v621
    %vm644 = vweird.f32 %v638
    %vm645 = vmor %vm643, %vm644
    %v646 = vsel %vm645, %v638, %v642
    %v647 = vand.u32 2147483647, %v621
    %vm648 = vcmp.eq.f32.partialorder %v647, 8.507059e+37
    %v649 = vand.u32 %v621, 2147483648
    %v650 = vor.u32 1.1754944e-38, %v649
    %v651 = vsel %vm648, %v650, %v646
    %v652 = vmul.f32 1.0, %v651
    %v653 = vrcp.pop %v622
    %v654 = vmul.f32 %v622, %v653
    %v655 = vsub.f32 1.0, %v654
    %v656 = vmul.f32 %v653, %v655
    %v657 = vadd.f32 %v653, %v656
    %vm658 = vweird.f32 %v622
    %vm659 = vweird.f32 %v653
    %vm660 = vmor %vm658, %vm659
    %v661 = vsel %vm660, %v653, %v657
    %v662 = vand.u32 2147483647, %v622
    %vm663 = vcmp.eq.f32.partialorder %v662, 8.507059e+37
    %v664 = vand.u32 %v622, 2147483648
    %v665 = vor.u32 1.1754944e-38, %v664
    %v666 = vsel %vm663, %v665, %v661
    %v667 = vmul.f32 1.0, %v666
    %v668 = vtanh.pop %v610
    %v669 = vmul.f32 %v652, %v520
    %v670 = vmul.f32 %v637, %v668
    %v671 = vadd.f32 %v669, %v670
    %v672 = vtanh.pop %v671
    %v673 = vmul.f32 %v667, %v672
    %v674 = vld [vmem:[#allocation2 + $0x40] sm:$0xff]
    %v675 = vld [vmem:[#allocation2 + $0x48] sm:$0xff]
    %v676 = vld [vmem:[#allocation2 + $0x50] sm:$0xff]
    %v677 = vld [vmem:[#allocation2 + $0x58] sm:$0xff]
    %678 = vmatpush.msra.mxu0 %v372
    %679 = vmatpush.msra.mxu0 %v368
    %680 = vmatpush.msra.mxu0 %v364
    %681 = vmatpush.msra.mxu0 %v360
    %682 = vmatpush.msra.mxu0 %v356
    %683 = vmatpush.msra.mxu0 %v352
    %684 = vmatpush.msra.mxu0 %v348
    %685 = vmatpush.msra.mxu0 %v344
    %686 = vmatpush.msra.mxu0 %v340
    %687 = vmatpush.msra.mxu0 %v336
    %688 = vmatpush.msra.mxu0 %v332
    %689 = vmatpush.msra.mxu0 %v328
    %690 = vmatpush.msra.mxu0 %v324
    %691 = vmatpush.msra.mxu0 %v320
    %692 = vmatpush.msra.mxu0 %v316
    %693 = vmatpush.msra.mxu0 %v312
    %694 = vmatmul.f32.gmra.mxu0 %v673
    %v695 = vpop.f32.mrf.mxu0
    %v696 = vadd.f32 0.0, %v695
    %697 = vdwg.mxu0
    %698 = vmatpush.msra.mxu0 %v373
    %699 = vmatpush.msra.mxu0 %v369
    %700 = vmatpush.msra.mxu0 %v365
    %701 = vmatpush.msra.mxu0 %v361
    %702 = vmatpush.msra.mxu0 %v357
    %703 = vmatpush.msra.mxu0 %v353
    %704 = vmatpush.msra.mxu0 %v349
    %705 = vmatpush.msra.mxu0 %v345
    %706 = vmatpush.msra.mxu0 %v341
    %707 = vmatpush.msra.mxu0 %v337
    %708 = vmatpush.msra.mxu0 %v333
    %709 = vmatpush.msra.mxu0 %v329
    %710 = vmatpush.msra.mxu0 %v325
    %711 = vmatpush.msra.mxu0 %v321
    %712 = vmatpush.msra.mxu0 %v317
    %713 = vmatpush.msra.mxu0 %v313
    %714 = vmatmul.f32.gmra.mxu0 %v673
    %v715 = vpop.f32.mrf.mxu0
    %v716 = vadd.f32 0.0, %v715
    %717 = vdwg.mxu0
    %718 = vmatpush.msra.mxu0 %v374
    %719 = vmatpush.msra.mxu0 %v370
    %720 = vmatpush.msra.mxu0 %v366
    %721 = vmatpush.msra.mxu0 %v362
    %722 = vmatpush.msra.mxu0 %v358
    %723 = vmatpush.msra.mxu0 %v354
    %724 = vmatpush.msra.mxu0 %v350
    %725 = vmatpush.msra.mxu0 %v346
    %726 = vmatpush.msra.mxu0 %v342
    %727 = vmatpush.msra.mxu0 %v338
    %728 = vmatpush.msra.mxu0 %v334
    %729 = vmatpush.msra.mxu0 %v330
    %730 = vmatpush.msra.mxu0 %v326
    %731 = vmatpush.msra.mxu0 %v322
    %732 = vmatpush.msra.mxu0 %v318
    %733 = vmatpush.msra.mxu0 %v314
    %734 = vmatmul.f32.gmra.mxu0 %v673
    %v735 = vpop.f32.mrf.mxu0
    %v736 = vadd.f32 0.0, %v735
    %737 = vdwg.mxu0
    %738 = vmatpush.msra.mxu0 %v375
    %739 = vmatpush.msra.mxu0 %v371
    %740 = vmatpush.msra.mxu0 %v367
    %741 = vmatpush.msra.mxu0 %v363
    %742 = vmatpush.msra.mxu0 %v359
    %743 = vmatpush.msra.mxu0 %v355
    %744 = vmatpush.msra.mxu0 %v351
    %745 = vmatpush.msra.mxu0 %v347
    %746 = vmatpush.msra.mxu0 %v343
    %747 = vmatpush.msra.mxu0 %v339
    %748 = vmatpush.msra.mxu0 %v335
    %749 = vmatpush.msra.mxu0 %v331
    %750 = vmatpush.msra.mxu0 %v327
    %751 = vmatpush.msra.mxu0 %v323
    %752 = vmatpush.msra.mxu0 %v319
    %753 = vmatpush.msra.mxu0 %v315
    %754 = vmatmul.f32.gmra.mxu0 %v673
    %v755 = vpop.f32.mrf.mxu0
    %v756 = vadd.f32 0.0, %v755
    %757 = vdwg.mxu0
    %v758 = vadd.f32 %v674, %v696
    %v759 = vadd.f32 %v675, %v716
    %v760 = vadd.f32 %v676, %v736
    %v761 = vadd.f32 %v677, %v756
    %v762 = vxor.u32 %v758, 2147483648
    %v763 = vxor.u32 %v759, 2147483648
    %v764 = vxor.u32 %v760, 2147483648
    %v765 = vmul.f32 %v762, 1.442695
    %v766 = vpow.pop %v765
    %v767 = vmul.f32 %v763, 1.442695
    %v768 = vpow.pop %v767
    %v769 = vmul.f32 %v764, 1.442695
    %v770 = vpow.pop %v769
    %v771 = vadd.f32 %v766, 1.0
    %v772 = vadd.f32 %v768, 1.0
    %v773 = vadd.f32 %v770, 1.0
    %v774 = vrcp.pop %v771
    %v775 = vmul.f32 %v771, %v774
    %v776 = vsub.f32 1.0, %v775
    %v777 = vmul.f32 %v774, %v776
    %v778 = vadd.f32 %v774, %v777
    %vm779 = vweird.f32 %v771
    %vm780 = vweird.f32 %v774
    %vm781 = vmor %vm779, %vm780
    %v782 = vsel %vm781, %v774, %v778
    %v783 = vand.u32 2147483647, %v771
    %vm784 = vcmp.eq.f32.partialorder %v783, 8.507059e+37
    %v785 = vand.u32 %v771, 2147483648
    %v786 = vor.u32 1.1754944e-38, %v785
    %v787 = vsel %vm784, %v786, %v782
    %v788 = vmul.f32 1.0, %v787
    %v789 = vrcp.pop %v772
    %v790 = vmul.f32 %v772, %v789
    %v791 = vsub.f32 1.0, %v790
    %v792 = vmul.f32 %v789, %v791
    %v793 = vadd.f32 %v789, %v792
    %vm794 = vweird.f32 %v772
    %vm795 = vweird.f32 %v789
    %vm796 = vmor %vm794, %vm795
    %v797 = vsel %vm796, %v789, %v793
    %v798 = vand.u32 2147483647, %v772
    %vm799 = vcmp.eq.f32.partialorder %v798, 8.507059e+37
    %v800 = vand.u32 %v772, 2147483648
    %v801 = vor.u32 1.1754944e-38, %v800
    %v802 = vsel %vm799, %v801, %v797
    %v803 = vmul.f32 1.0, %v802
    %v804 = vrcp.pop %v773
    %v805 = vmul.f32 %v773, %v804
    %v806 = vsub.f32 1.0, %v805
    %v807 = vmul.f32 %v804, %v806
    %v808 = vadd.f32 %v804, %v807
    %vm809 = vweird.f32 %v773
    %vm810 = vweird.f32 %v804
    %vm811 = vmor %vm809, %vm810
    %v812 = vsel %vm811, %v804, %v808
    %v813 = vand.u32 2147483647, %v773
    %vm814 = vcmp.eq.f32.partialorder %v813, 8.507059e+37
    %v815 = vand.u32 %v773, 2147483648
    %v816 = vor.u32 1.1754944e-38, %v815
    %v817 = vsel %vm814, %v816, %v812
    %v818 = vmul.f32 1.0, %v817
    %v819 = vtanh.pop %v761
    %v820 = vmul.f32 %v803, %v671
    %v821 = vmul.f32 %v788, %v819
    %v822 = vadd.f32 %v820, %v821
    %v823 = vtanh.pop %v822
    %v824 = vmul.f32 %v818, %v823
    %v825 = vld [vmem:[#allocation2 + $0x60] sm:$0xff]
    %v826 = vld [vmem:[#allocation2 + $0x68] sm:$0xff]
    %v827 = vld [vmem:[#allocation2 + $0x70] sm:$0xff]
    %v828 = vld [vmem:[#allocation2 + $0x78] sm:$0xff]
    %829 = vmatpush.msra.mxu0 %v372
    %830 = vmatpush.msra.mxu0 %v368
    %831 = vmatpush.msra.mxu0 %v364
    %832 = vmatpush.msra.mxu0 %v360
    %833 = vmatpush.msra.mxu0 %v356
    %834 = vmatpush.msra.mxu0 %v352
    %835 = vmatpush.msra.mxu0 %v348
    %836 = vmatpush.msra.mxu0 %v344
    %837 = vmatpush.msra.mxu0 %v340
    %838 = vmatpush.msra.mxu0 %v336
    %839 = vmatpush.msra.mxu0 %v332
    %840 = vmatpush.msra.mxu0 %v328
    %841 = vmatpush.msra.mxu0 %v324
    %842 = vmatpush.msra.mxu0 %v320
    %843 = vmatpush.msra.mxu0 %v316
    %844 = vmatpush.msra.mxu0 %v312
    %845 = vmatmul.f32.gmra.mxu0 %v824
    %v846 = vpop.f32.mrf.mxu0
    %v847 = vadd.f32 0.0, %v846
    %848 = vdwg.mxu0
    %849 = vmatpush.msra.mxu0 %v373
    %850 = vmatpush.msra.mxu0 %v369
    %851 = vmatpush.msra.mxu0 %v365
    %852 = vmatpush.msra.mxu0 %v361
    %853 = vmatpush.msra.mxu0 %v357
    %854 = vmatpush.msra.mxu0 %v353
    %855 = vmatpush.msra.mxu0 %v349
    %856 = vmatpush.msra.mxu0 %v345
    %857 = vmatpush.msra.mxu0 %v341
    %858 = vmatpush.msra.mxu0 %v337
    %859 = vmatpush.msra.mxu0 %v333
    %860 = vmatpush.msra.mxu0 %v329
    %861 = vmatpush.msra.mxu0 %v325
    %862 = vmatpush.msra.mxu0 %v321
    %863 = vmatpush.msra.mxu0 %v317
    %864 = vmatpush.msra.mxu0 %v313
    %865 = vmatmul.f32.gmra.mxu0 %v824
    %v866 = vpop.f32.mrf.mxu0
    %v867 = vadd.f32 0.0, %v866
    %868 = vdwg.mxu0
    %869 = vmatpush.msra.mxu0 %v374
    %870 = vmatpush.msra.mxu0 %v370
    %871 = vmatpush.msra.mxu0 %v366
    %872 = vmatpush.msra.mxu0 %v362
    %873 = vmatpush.msra.mxu0 %v358
    %874 = vmatpush.msra.mxu0 %v354
    %875 = vmatpush.msra.mxu0 %v350
    %876 = vmatpush.msra.mxu0 %v346
    %877 = vmatpush.msra.mxu0 %v342
    %878 = vmatpush.msra.mxu0 %v338
    %879 = vmatpush.msra.mxu0 %v334
    %880 = vmatpush.msra.mxu0 %v330
    %881 = vmatpush.msra.mxu0 %v326
    %882 = vmatpush.msra.mxu0 %v322
    %883 = vmatpush.msra.mxu0 %v318
    %884 = vmatpush.msra.mxu0 %v314
    %885 = vmatmul.f32.gmra.mxu0 %v824
    %v886 = vpop.f32.mrf.mxu0
    %v887 = vadd.f32 0.0, %v886
    %888 = vdwg.mxu0
    %889 = vmatpush.msra.mxu0 %v375
    %890 = vmatpush.msra.mxu0 %v371
    %891 = vmatpush.msra.mxu0 %v367
    %892 = vmatpush.msra.mxu0 %v363
    %893 = vmatpush.msra.mxu0 %v359
    %894 = vmatpush.msra.mxu0 %v355
    %895 = vmatpush.msra.mxu0 %v351
    %896 = vmatpush.msra.mxu0 %v347
    %897 = vmatpush.msra.mxu0 %v343
    %898 = vmatpush.msra.mxu0 %v339
    %899 = vmatpush.msra.mxu0 %v335
    %900 = vmatpush.msra.mxu0 %v331
    %901 = vmatpush.msra.mxu0 %v327
    %902 = vmatpush.msra.mxu0 %v323
    %903 = vmatpush.msra.mxu0 %v319
    %904 = vmatpush.msra.mxu0 %v315
    %905 = vmatmul.f32.gmra.mxu0 %v824
    %v906 = vpop.f32.mrf.mxu0
    %v907 = vadd.f32 0.0, %v906
    %908 = vdwg.mxu0
    %v909 = vadd.f32 %v825, %v847
    %v910 = vadd.f32 %v826, %v867
    %v911 = vadd.f32 %v827, %v887
    %v912 = vadd.f32 %v828, %v907
    %v913 = vxor.u32 %v909, 2147483648
    %v914 = vxor.u32 %v910, 2147483648
    %v915 = vxor.u32 %v911, 2147483648
    %v916 = vmul.f32 %v913, 1.442695
    %v917 = vpow.pop %v916
    %v918 = vmul.f32 %v914, 1.442695
    %v919 = vpow.pop %v918
    %v920 = vmul.f32 %v915, 1.442695
    %v921 = vpow.pop %v920
    %v922 = vadd.f32 %v917, 1.0
    %v923 = vadd.f32 %v919, 1.0
    %v924 = vadd.f32 %v921, 1.0
    %v925 = vrcp.pop %v922
    %v926 = vmul.f32 %v922, %v925
    %v927 = vsub.f32 1.0, %v926
    %v928 = vmul.f32 %v925, %v927
    %v929 = vadd.f32 %v925, %v928
    %vm930 = vweird.f32 %v922
    %vm931 = vweird.f32 %v925
    %vm932 = vmor %vm930, %vm931
    %v933 = vsel %vm932, %v925, %v929
    %v934 = vand.u32 2147483647, %v922
    %vm935 = vcmp.eq.f32.partialorder %v934, 8.507059e+37
    %v936 = vand.u32 %v922, 2147483648
    %v937 = vor.u32 1.1754944e-38, %v936
    %v938 = vsel %vm935, %v937, %v933
    %v939 = vmul.f32 1.0, %v938
    %v940 = vrcp.pop %v923
    %v941 = vmul.f32 %v923, %v940
    %v942 = vsub.f32 1.0, %v941
    %v943 = vmul.f32 %v940, %v942
    %v944 = vadd.f32 %v940, %v943
    %vm945 = vweird.f32 %v923
    %vm946 = vweird.f32 %v940
    %vm947 = vmor %vm945, %vm946
    %v948 = vsel %vm947, %v940, %v944
    %v949 = vand.u32 2147483647, %v923
    %vm950 = vcmp.eq.f32.partialorder %v949, 8.507059e+37
    %v951 = vand.u32 %v923, 2147483648
    %v952 = vor.u32 1.1754944e-38, %v951
    %v953 = vsel %vm950, %v952, %v948
    %v954 = vmul.f32 1.0, %v953
    %v955 = vrcp.pop %v924
    %v956 = vmul.f32 %v924, %v955
    %v957 = vsub.f32 1.0, %v956
    %v958 = vmul.f32 %v955, %v957
    %v959 = vadd.f32 %v955, %v958
    %vm960 = vweird.f32 %v924
    %vm961 = vweird.f32 %v955
    %vm962 = vmor %vm960, %vm961
    %v963 = vsel %vm962, %v955, %v959
    %v964 = vand.u32 2147483647, %v924
    %vm965 = vcmp.eq.f32.partialorder %v964, 8.507059e+37
    %v966 = vand.u32 %v924, 2147483648
    %v967 = vor.u32 1.1754944e-38, %v966
    %v968 = vsel %vm965, %v967, %v963
    %v969 = vmul.f32 1.0, %v968
    %v970 = vtanh.pop %v912
    %v971 = vmul.f32 %v954, %v822
    %v972 = vmul.f32 %v939, %v970
    %v973 = vadd.f32 %v971, %v972
    %v974 = vtanh.pop %v973
    %v975 = vmul.f32 %v969, %v974
    %v976 = vld [vmem:[#allocation2 + $0x80] sm:$0xff]
    %v977 = vld [vmem:[#allocation2 + $0x88] sm:$0xff]
    %v978 = vld [vmem:[#allocation2 + $0x90] sm:$0xff]
    %v979 = vld [vmem:[#allocation2 + $0x98] sm:$0xff]
    %980 = vmatpush.msra.mxu0 %v372
    %981 = vmatpush.msra.mxu0 %v368
    %982 = vmatpush.msra.mxu0 %v364
    %983 = vmatpush.msra.mxu0 %v360
    %984 = vmatpush.msra.mxu0 %v356
    %985 = vmatpush.msra.mxu0 %v352
    %986 = vmatpush.msra.mxu0 %v348
    %987 = vmatpush.msra.mxu0 %v344
    %988 = vmatpush.msra.mxu0 %v340
    %989 = vmatpush.msra.mxu0 %v336
    %990 = vmatpush.msra.mxu0 %v332
    %991 = vmatpush.msra.mxu0 %v328
    %992 = vmatpush.msra.mxu0 %v324
    %993 = vmatpush.msra.mxu0 %v320
    %994 = vmatpush.msra.mxu0 %v316
    %995 = vmatpush.msra.mxu0 %v312
    %996 = vmatmul.f32.gmra.mxu0 %v975
    %v997 = vpop.f32.mrf.mxu0
    %v998 = vadd.f32 0.0, %v997
    %999 = vdwg.mxu0
    %1000 = vmatpush.msra.mxu0 %v373
    %1001 = vmatpush.msra.mxu0 %v369
    %1002 = vmatpush.msra.mxu0 %v365
    %1003 = vmatpush.msra.mxu0 %v361
    %1004 = vmatpush.msra.mxu0 %v357
    %1005 = vmatpush.msra.mxu0 %v353
    %1006 = vmatpush.msra.mxu0 %v349
    %1007 = vmatpush.msra.mxu0 %v345
    %1008 = vmatpush.msra.mxu0 %v341
    %1009 = vmatpush.msra.mxu0 %v337
    %1010 = vmatpush.msra.mxu0 %v333
    %1011 = vmatpush.msra.mxu0 %v329
    %1012 = vmatpush.msra.mxu0 %v325
    %1013 = vmatpush.msra.mxu0 %v321
    %1014 = vmatpush.msra.mxu0 %v317
    %1015 = vmatpush.msra.mxu0 %v313
    %1016 = vmatmul.f32.gmra.mxu0 %v975
    %v1017 = vpop.f32.mrf.mxu0
    %v1018 = vadd.f32 0.0, %v1017
    %1019 = vdwg.mxu0
    %1020 = vmatpush.msra.mxu0 %v374
    %1021 = vmatpush.msra.mxu0 %v370
    %1022 = vmatpush.msra.mxu0 %v366
    %1023 = vmatpush.msra.mxu0 %v362
    %1024 = vmatpush.msra.mxu0 %v358
    %1025 = vmatpush.msra.mxu0 %v354
    %1026 = vmatpush.msra.mxu0 %v350
    %1027 = vmatpush.msra.mxu0 %v346
    %1028 = vmatpush.msra.mxu0 %v342
    %1029 = vmatpush.msra.mxu0 %v338
    %1030 = vmatpush.msra.mxu0 %v334
    %1031 = vmatpush.msra.mxu0 %v330
    %1032 = vmatpush.msra.mxu0 %v326
    %1033 = vmatpush.msra.mxu0 %v322
    %1034 = vmatpush.msra.mxu0 %v318
    %1035 = vmatpush.msra.mxu0 %v314
    %1036 = vmatmul.f32.gmra.mxu0 %v975
    %v1037 = vpop.f32.mrf.mxu0
    %v1038 = vadd.f32 0.0, %v1037
    %1039 = vdwg.mxu0
    %1040 = vmatpush.msra.mxu0 %v375
    %1041 = vmatpush.msra.mxu0 %v371
    %1042 = vmatpush.msra.mxu0 %v367
    %1043 = vmatpush.msra.mxu0 %v363
    %1044 = vmatpush.msra.mxu0 %v359
    %1045 = vmatpush.msra.mxu0 %v355
    %1046 = vmatpush.msra.mxu0 %v351
    %1047 = vmatpush.msra.mxu0 %v347
    %1048 = vmatpush.msra.mxu0 %v343
    %1049 = vmatpush.msra.mxu0 %v339
    %1050 = vmatpush.msra.mxu0 %v335
    %1051 = vmatpush.msra.mxu0 %v331
    %1052 = vmatpush.msra.mxu0 %v327
    %1053 = vmatpush.msra.mxu0 %v323
    %1054 = vmatpush.msra.mxu0 %v319
    %1055 = vmatpush.msra.mxu0 %v315
    %1056 = vmatmul.f32.gmra.mxu0 %v975
    %v1057 = vpop.f32.mrf.mxu0
    %v1058 = vadd.f32 0.0, %v1057
    %1059 = vdwg.mxu0
    %v1060 = vadd.f32 %v976, %v998
    %v1061 = vadd.f32 %v977, %v1018
    %v1062 = vadd.f32 %v978, %v1038
    %v1063 = vadd.f32 %v979, %v1058
    %v1064 = vxor.u32 %v1060, 2147483648
    %v1065 = vxor.u32 %v1061, 2147483648
    %v1066 = vxor.u32 %v1062, 2147483648
    %v1067 = vmul.f32 %v1064, 1.442695
    %v1068 = vpow.pop %v1067
    %v1069 = vmul.f32 %v1065, 1.442695
    %v1070 = vpow.pop %v1069
    %v1071 = vmul.f32 %v1066, 1.442695
    %v1072 = vpow.pop %v1071
    %v1073 = vadd.f32 %v1068, 1.0
    %v1074 = vadd.f32 %v1070, 1.0
    %v1075 = vadd.f32 %v1072, 1.0
    %v1076 = vrcp.pop %v1073
    %v1077 = vmul.f32 %v1073, %v1076
    %v1078 = vsub.f32 1.0, %v1077
    %v1079 = vmul.f32 %v1076, %v1078
    %v1080 = vadd.f32 %v1076, %v1079
    %vm1081 = vweird.f32 %v1073
    %vm1082 = vweird.f32 %v1076
    %vm1083 = vmor %vm1081, %vm1082
    %v1084 = vsel %vm1083, %v1076, %v1080
    %v1085 = vand.u32 2147483647, %v1073
    %vm1086 = vcmp.eq.f32.partialorder %v1085, 8.507059e+37
    %v1087 = vand.u32 %v1073, 2147483648
    %v1088 = vor.u32 1.1754944e-38, %v1087
    %v1089 = vsel %vm1086, %v1088, %v1084
    %v1090 = vmul.f32 1.0, %v1089
    %v1091 = vrcp.pop %v1074
    %v1092 = vmul.f32 %v1074, %v1091
    %v1093 = vsub.f32 1.0, %v1092
    %v1094 = vmul.f32 %v1091, %v1093
    %v1095 = vadd.f32 %v1091, %v1094
    %vm1096 = vweird.f32 %v1074
    %vm1097 = vweird.f32 %v1091
    %vm1098 = vmor %vm1096, %vm1097
    %v1099 = vsel %vm1098, %v1091, %v1095
    %v1100 = vand.u32 2147483647, %v1074
    %vm1101 = vcmp.eq.f32.partialorder %v1100, 8.507059e+37
    %v1102 = vand.u32 %v1074, 2147483648
    %v1103 = vor.u32 1.1754944e-38, %v1102
    %v1104 = vsel %vm1101, %v1103, %v1099
    %v1105 = vmul.f32 1.0, %v1104
    %v1106 = vrcp.pop %v1075
    %v1107 = vmul.f32 %v1075, %v1106
    %v1108 = vsub.f32 1.0, %v1107
    %v1109 = vmul.f32 %v1106, %v1108
    %v1110 = vadd.f32 %v1106, %v1109
    %vm1111 = vweird.f32 %v1075
    %vm1112 = vweird.f32 %v1106
    %vm1113 = vmor %vm1111, %vm1112
    %v1114 = vsel %vm1113, %v1106, %v1110
    %v1115 = vand.u32 2147483647, %v1075
    %vm1116 = vcmp.eq.f32.partialorder %v1115, 8.507059e+37
    %v1117 = vand.u32 %v1075, 2147483648
    %v1118 = vor.u32 1.1754944e-38, %v1117
    %v1119 = vsel %vm1116, %v1118, %v1114
    %v1120 = vmul.f32 1.0, %v1119
    %v1121 = vtanh.pop %v1063
    %v1122 = vmul.f32 %v1105, %v973
    %v1123 = vmul.f32 %v1090, %v1121
    %v1124 = vadd.f32 %v1122, %v1123
    %v1125 = vtanh.pop %v1124
    %v1126 = vmul.f32 %v1120, %v1125
    %v1127 = vld [vmem:[#allocation2 + $0xa0] sm:$0xff]
    %v1128 = vld [vmem:[#allocation2 + $0xa8] sm:$0xff]
    %v1129 = vld [vmem:[#allocation2 + $0xb0] sm:$0xff]
    %v1130 = vld [vmem:[#allocation2 + $0xb8] sm:$0xff]
    %1131 = vmatpush.msra.mxu0 %v372
    %1132 = vmatpush.msra.mxu0 %v368
    %1133 = vmatpush.msra.mxu0 %v364
    %1134 = vmatpush.msra.mxu0 %v360
    %1135 = vmatpush.msra.mxu0 %v356
    %1136 = vmatpush.msra.mxu0 %v352
    %1137 = vmatpush.msra.mxu0 %v348
    %1138 = vmatpush.msra.mxu0 %v344
    %1139 = vmatpush.msra.mxu0 %v340
    %1140 = vmatpush.msra.mxu0 %v336
    %1141 = vmatpush.msra.mxu0 %v332
    %1142 = vmatpush.msra.mxu0 %v328
    %1143 = vmatpush.msra.mxu0 %v324
    %1144 = vmatpush.msra.mxu0 %v320
    %1145 = vmatpush.msra.mxu0 %v316
    %1146 = vmatpush.msra.mxu0 %v312
    %1147 = vmatmul.f32.gmra.mxu0 %v1126
    %v1148 = vpop.f32.mrf.mxu0
    %v1149 = vadd.f32 0.0, %v1148
    %1150 = vdwg.mxu0
    %1151 = vmatpush.msra.mxu0 %v373
    %1152 = vmatpush.msra.mxu0 %v369
    %1153 = vmatpush.msra.mxu0 %v365
    %1154 = vmatpush.msra.mxu0 %v361
    %1155 = vmatpush.msra.mxu0 %v357
    %1156 = vmatpush.msra.mxu0 %v353
    %1157 = vmatpush.msra.mxu0 %v349
    %1158 = vmatpush.msra.mxu0 %v345
    %1159 = vmatpush.msra.mxu0 %v341
    %1160 = vmatpush.msra.mxu0 %v337
    %1161 = vmatpush.msra.mxu0 %v333
    %1162 = vmatpush.msra.mxu0 %v329
    %1163 = vmatpush.msra.mxu0 %v325
    %1164 = vmatpush.msra.mxu0 %v321
    %1165 = vmatpush.msra.mxu0 %v317
    %1166 = vmatpush.msra.mxu0 %v313
    %1167 = vmatmul.f32.gmra.mxu0 %v1126
    %v1168 = vpop.f32.mrf.mxu0
    %v1169 = vadd.f32 0.0, %v1168
    %1170 = vdwg.mxu0
    %1171 = vmatpush.msra.mxu0 %v374
    %1172 = vmatpush.msra.mxu0 %v370
    %1173 = vmatpush.msra.mxu0 %v366
    %1174 = vmatpush.msra.mxu0 %v362
    %1175 = vmatpush.msra.mxu0 %v358
    %1176 = vmatpush.msra.mxu0 %v354
    %1177 = vmatpush.msra.mxu0 %v350
    %1178 = vmatpush.msra.mxu0 %v346
    %1179 = vmatpush.msra.mxu0 %v342
    %1180 = vmatpush.msra.mxu0 %v338
    %1181 = vmatpush.msra.mxu0 %v334
    %1182 = vmatpush.msra.mxu0 %v330
    %1183 = vmatpush.msra.mxu0 %v326
    %1184 = vmatpush.msra.mxu0 %v322
    %1185 = vmatpush.msra.mxu0 %v318
    %1186 = vmatpush.msra.mxu0 %v314
    %1187 = vmatmul.f32.gmra.mxu0 %v1126
    %v1188 = vpop.f32.mrf.mxu0
    %v1189 = vadd.f32 0.0, %v1188
    %1190 = vdwg.mxu0
    %1191 = vmatpush.msra.mxu0 %v375
    %1192 = vmatpush.msra.mxu0 %v371
    %1193 = vmatpush.msra.mxu0 %v367
    %1194 = vmatpush.msra.mxu0 %v363
    %1195 = vmatpush.msra.mxu0 %v359
    %1196 = vmatpush.msra.mxu0 %v355
    %1197 = vmatpush.msra.mxu0 %v351
    %1198 = vmatpush.msra.mxu0 %v347
    %1199 = vmatpush.msra.mxu0 %v343
    %1200 = vmatpush.msra.mxu0 %v339
    %1201 = vmatpush.msra.mxu0 %v335
    %1202 = vmatpush.msra.mxu0 %v331
    %1203 = vmatpush.msra.mxu0 %v327
    %1204 = vmatpush.msra.mxu0 %v323
    %1205 = vmatpush.msra.mxu0 %v319
    %1206 = vmatpush.msra.mxu0 %v315
    %1207 = vmatmul.f32.gmra.mxu0 %v1126
    %v1208 = vpop.f32.mrf.mxu0
    %v1209 = vadd.f32 0.0, %v1208
    %1210 = vdwg.mxu0
    %v1211 = vadd.f32 %v1127, %v1149
    %v1212 = vadd.f32 %v1128, %v1169
    %v1213 = vadd.f32 %v1129, %v1189
    %v1214 = vadd.f32 %v1130, %v1209
    %v1215 = vxor.u32 %v1211, 2147483648
    %v1216 = vxor.u32 %v1212, 2147483648
    %v1217 = vxor.u32 %v1213, 2147483648
    %v1218 = vmul.f32 %v1215, 1.442695
    %v1219 = vpow.pop %v1218
    %v1220 = vmul.f32 %v1216, 1.442695
    %v1221 = vpow.pop %v1220
    %v1222 = vmul.f32 %v1217, 1.442695
    %v1223 = vpow.pop %v1222
    %v1224 = vadd.f32 %v1219, 1.0
    %v1225 = vadd.f32 %v1221, 1.0
    %v1226 = vadd.f32 %v1223, 1.0
    %v1227 = vrcp.pop %v1224
    %v1228 = vmul.f32 %v1224, %v1227
    %v1229 = vsub.f32 1.0, %v1228
    %v1230 = vmul.f32 %v1227, %v1229
    %v1231 = vadd.f32 %v1227, %v1230
    %vm1232 = vweird.f32 %v1224
    %vm1233 = vweird.f32 %v1227
    %vm1234 = vmor %vm1232, %vm1233
    %v1235 = vsel %vm1234, %v1227, %v1231
    %v1236 = vand.u32 2147483647, %v1224
    %vm1237 = vcmp.eq.f32.partialorder %v1236, 8.507059e+37
    %v1238 = vand.u32 %v1224, 2147483648
    %v1239 = vor.u32 1.1754944e-38, %v1238
    %v1240 = vsel %vm1237, %v1239, %v1235
    %v1241 = vmul.f32 1.0, %v1240
    %v1242 = vrcp.pop %v1225
    %v1243 = vmul.f32 %v1225, %v1242
    %v1244 = vsub.f32 1.0, %v1243
    %v1245 = vmul.f32 %v1242, %v1244
    %v1246 = vadd.f32 %v1242, %v1245
    %vm1247 = vweird.f32 %v1225
    %vm1248 = vweird.f32 %v1242
    %vm1249 = vmor %vm1247, %vm1248
    %v1250 = vsel %vm1249, %v1242, %v1246
    %v1251 = vand.u32 2147483647, %v1225
    %vm1252 = vcmp.eq.f32.partialorder %v1251, 8.507059e+37
    %v1253 = vand.u32 %v1225, 2147483648
    %v1254 = vor.u32 1.1754944e-38, %v1253
    %v1255 = vsel %vm1252, %v1254, %v1250
    %v1256 = vmul.f32 1.0, %v1255
    %v1257 = vrcp.pop %v1226
    %v1258 = vmul.f32 %v1226, %v1257
    %v1259 = vsub.f32 1.0, %v1258
    %v1260 = vmul.f32 %v1257, %v1259
    %v1261 = vadd.f32 %v1257, %v1260
    %vm1262 = vweird.f32 %v1226
    %vm1263 = vweird.f32 %v1257
    %vm1264 = vmor %vm1262, %vm1263
    %v1265 = vsel %vm1264, %v1257, %v1261
    %v1266 = vand.u32 2147483647, %v1226
    %vm1267 = vcmp.eq.f32.partialorder %v1266, 8.507059e+37
    %v1268 = vand.u32 %v1226, 2147483648
    %v1269 = vor.u32 1.1754944e-38, %v1268
    %v1270 = vsel %vm1267, %v1269, %v1265
    %v1271 = vmul.f32 1.0, %v1270
    %v1272 = vtanh.pop %v1214
    %v1273 = vmul.f32 %v1256, %v1124
    %v1274 = vmul.f32 %v1241, %v1272
    %v1275 = vadd.f32 %v1273, %v1274
    %v1276 = vtanh.pop %v1275
    %v1277 = vmul.f32 %v1271, %v1276
    %v1278 = vld [vmem:[#allocation2 + $0xc0] sm:$0xff]
    %v1279 = vld [vmem:[#allocation2 + $0xc8] sm:$0xff]
    %v1280 = vld [vmem:[#allocation2 + $0xd0] sm:$0xff]
    %v1281 = vld [vmem:[#allocation2 + $0xd8] sm:$0xff]
    %1282 = vmatpush.msra.mxu0 %v372
    %1283 = vmatpush.msra.mxu0 %v368
    %1284 = vmatpush.msra.mxu0 %v364
    %1285 = vmatpush.msra.mxu0 %v360
    %1286 = vmatpush.msra.mxu0 %v356
    %1287 = vmatpush.msra.mxu0 %v352
    %1288 = vmatpush.msra.mxu0 %v348
    %1289 = vmatpush.msra.mxu0 %v344
    %1290 = vmatpush.msra.mxu0 %v340
    %1291 = vmatpush.msra.mxu0 %v336
    %1292 = vmatpush.msra.mxu0 %v332
    %1293 = vmatpush.msra.mxu0 %v328
    %1294 = vmatpush.msra.mxu0 %v324
    %1295 = vmatpush.msra.mxu0 %v320
    %1296 = vmatpush.msra.mxu0 %v316
    %1297 = vmatpush.msra.mxu0 %v312
    %1298 = vmatmul.f32.gmra.mxu0 %v1277
    %v1299 = vpop.f32.mrf.mxu0
    %v1300 = vadd.f32 0.0, %v1299
    %1301 = vdwg.mxu0
    %1302 = vmatpush.msra.mxu0 %v373
    %1303 = vmatpush.msra.mxu0 %v369
    %1304 = vmatpush.msra.mxu0 %v365
    %1305 = vmatpush.msra.mxu0 %v361
    %1306 = vmatpush.msra.mxu0 %v357
    %1307 = vmatpush.msra.mxu0 %v353
    %1308 = vmatpush.msra.mxu0 %v349
    %1309 = vmatpush.msra.mxu0 %v345
    %1310 = vmatpush.msra.mxu0 %v341
    %1311 = vmatpush.msra.mxu0 %v337
    %1312 = vmatpush.msra.mxu0 %v333
    %1313 = vmatpush.msra.mxu0 %v329
    %1314 = vmatpush.msra.mxu0 %v325
    %1315 = vmatpush.msra.mxu0 %v321
    %1316 = vmatpush.msra.mxu0 %v317
    %1317 = vmatpush.msra.mxu0 %v313
    %1318 = vmatmul.f32.gmra.mxu0 %v1277
    %v1319 = vpop.f32.mrf.mxu0
    %v1320 = vadd.f32 0.0, %v1319
    %1321 = vdwg.mxu0
    %1322 = vmatpush.msra.mxu0 %v374
    %1323 = vmatpush.msra.mxu0 %v370
    %1324 = vmatpush.msra.mxu0 %v366
    %1325 = vmatpush.msra.mxu0 %v362
    %1326 = vmatpush.msra.mxu0 %v358
    %1327 = vmatpush.msra.mxu0 %v354
    %1328 = vmatpush.msra.mxu0 %v350
    %1329 = vmatpush.msra.mxu0 %v346
    %1330 = vmatpush.msra.mxu0 %v342
    %1331 = vmatpush.msra.mxu0 %v338
    %1332 = vmatpush.msra.mxu0 %v334
    %1333 = vmatpush.msra.mxu0 %v330
    %1334 = vmatpush.msra.mxu0 %v326
    %1335 = vmatpush.msra.mxu0 %v322
    %1336 = vmatpush.msra.mxu0 %v318
    %1337 = vmatpush.msra.mxu0 %v314
    %1338 = vmatmul.f32.gmra.mxu0 %v1277
    %v1339 = vpop.f32.mrf.mxu0
    %v1340 = vadd.f32 0.0, %v1339
    %1341 = vdwg.mxu0
    %1342 = vmatpush.msra.mxu0 %v375
    %1343 = vmatpush.msra.mxu0 %v371
    %1344 = vmatpush.msra.mxu0 %v367
    %1345 = vmatpush.msra.mxu0 %v363
    %1346 = vmatpush.msra.mxu0 %v359
    %1347 = vmatpush.msra.mxu0 %v355
    %1348 = vmatpush.msra.mxu0 %v351
    %1349 = vmatpush.msra.mxu0 %v347
    %1350 = vmatpush.msra.mxu0 %v343
    %1351 = vmatpush.msra.mxu0 %v339
    %1352 = vmatpush.msra.mxu0 %v335
    %1353 = vmatpush.msra.mxu0 %v331
    %1354 = vmatpush.msra.mxu0 %v327
    %1355 = vmatpush.msra.mxu0 %v323
    %1356 = vmatpush.msra.mxu0 %v319
    %1357 = vmatpush.msra.mxu0 %v315
    %1358 = vmatmul.f32.gmra.mxu0 %v1277
    %v1359 = vpop.f32.mrf.mxu0
    %v1360 = vadd.f32 0.0, %v1359
    %1361 = vdwg.mxu0
    %v1362 = vadd.f32 %v1278, %v1300
    %v1363 = vadd.f32 %v1279, %v1320
    %v1364 = vadd.f32 %v1280, %v1340
    %v1365 = vadd.f32 %v1281, %v1360
    %v1366 = vxor.u32 %v1362, 2147483648
    %v1367 = vxor.u32 %v1363, 2147483648
    %v1368 = vxor.u32 %v1364, 2147483648
    %v1369 = vmul.f32 %v1366, 1.442695
    %v1370 = vpow.pop %v1369
    %v1371 = vmul.f32 %v1367, 1.442695
    %v1372 = vpow.pop %v1371
    %v1373 = vmul.f32 %v1368, 1.442695
    %v1374 = vpow.pop %v1373
    %v1375 = vadd.f32 %v1370, 1.0
    %v1376 = vadd.f32 %v1372, 1.0
    %v1377 = vadd.f32 %v1374, 1.0
    %v1378 = vrcp.pop %v1375
    %v1379 = vmul.f32 %v1375, %v1378
    %v1380 = vsub.f32 1.0, %v1379
    %v1381 = vmul.f32 %v1378, %v1380
    %v1382 = vadd.f32 %v1378, %v1381
    %vm1383 = vweird.f32 %v1375
    %vm1384 = vweird.f32 %v1378
    %vm1385 = vmor %vm1383, %vm1384
    %v1386 = vsel %vm1385, %v1378, %v1382
    %v1387 = vand.u32 2147483647, %v1375
    %vm1388 = vcmp.eq.f32.partialorder %v1387, 8.507059e+37
    %v1389 = vand.u32 %v1375, 2147483648
    %v1390 = vor.u32 1.1754944e-38, %v1389
    %v1391 = vsel %vm1388, %v1390, %v1386
    %v1392 = vmul.f32 1.0, %v1391
    %v1393 = vrcp.pop %v1376
    %v1394 = vmul.f32 %v1376, %v1393
    %v1395 = vsub.f32 1.0, %v1394
    %v1396 = vmul.f32 %v1393, %v1395
    %v1397 = vadd.f32 %v1393, %v1396
    %vm1398 = vweird.f32 %v1376
    %vm1399 = vweird.f32 %v1393
    %vm1400 = vmor %vm1398, %vm1399
    %v1401 = vsel %vm1400, %v1393, %v1397
    %v1402 = vand.u32 2147483647, %v1376
    %vm1403 = vcmp.eq.f32.partialorder %v1402, 8.507059e+37
    %v1404 = vand.u32 %v1376, 2147483648
    %v1405 = vor.u32 1.1754944e-38, %v1404
    %v1406 = vsel %vm1403, %v1405, %v1401
    %v1407 = vmul.f32 1.0, %v1406
    %v1408 = vrcp.pop %v1377
    %v1409 = vmul.f32 %v1377, %v1408
    %v1410 = vsub.f32 1.0, %v1409
    %v1411 = vmul.f32 %v1408, %v1410
    %v1412 = vadd.f32 %v1408, %v1411
    %vm1413 = vweird.f32 %v1377
    %vm1414 = vweird.f32 %v1408
    %vm1415 = vmor %vm1413, %vm1414
    %v1416 = vsel %vm1415, %v1408, %v1412
    %v1417 = vand.u32 2147483647, %v1377
    %vm1418 = vcmp.eq.f32.partialorder %v1417, 8.507059e+37
    %v1419 = vand.u32 %v1377, 2147483648
    %v1420 = vor.u32 1.1754944e-38, %v1419
    %v1421 = vsel %vm1418, %v1420, %v1416
    %v1422 = vmul.f32 1.0, %v1421
    %v1423 = vtanh.pop %v1365
    %v1424 = vmul.f32 %v1407, %v1275
    %v1425 = vmul.f32 %v1392, %v1423
    %v1426 = vadd.f32 %v1424, %v1425
    %v1427 = vtanh.pop %v1426
    %v1428 = vmul.f32 %v1422, %v1427
    %v1429 = vld [vmem:[#allocation2 + $0xe0] sm:$0xff]
    %v1430 = vld [vmem:[#allocation2 + $0xe8] sm:$0xff]
    %v1431 = vld [vmem:[#allocation2 + $0xf0] sm:$0xff]
    %v1432 = vld [vmem:[#allocation2 + $0xf8] sm:$0xff]
    %1433 = vmatpush.msra.mxu0 %v372
    %1434 = vmatpush.msra.mxu0 %v368
    %1435 = vmatpush.msra.mxu0 %v364
    %1436 = vmatpush.msra.mxu0 %v360
    %1437 = vmatpush.msra.mxu0 %v356
    %1438 = vmatpush.msra.mxu0 %v352
    %1439 = vmatpush.msra.mxu0 %v348
    %1440 = vmatpush.msra.mxu0 %v344
    %1441 = vmatpush.msra.mxu0 %v340
    %1442 = vmatpush.msra.mxu0 %v336
    %1443 = vmatpush.msra.mxu0 %v332
    %1444 = vmatpush.msra.mxu0 %v328
    %1445 = vmatpush.msra.mxu0 %v324
    %1446 = vmatpush.msra.mxu0 %v320
    %1447 = vmatpush.msra.mxu0 %v316
    %1448 = vmatpush.msra.mxu0 %v312
    %1449 = vmatmul.f32.gmra.mxu0 %v1428
    %v1450 = vpop.f32.mrf.mxu0
    %v1451 = vadd.f32 0.0, %v1450
    %1452 = vdwg.mxu0
    %1453 = vmatpush.msra.mxu0 %v373
    %1454 = vmatpush.msra.mxu0 %v369
    %1455 = vmatpush.msra.mxu0 %v365
    %1456 = vmatpush.msra.mxu0 %v361
    %1457 = vmatpush.msra.mxu0 %v357
    %1458 = vmatpush.msra.mxu0 %v353
    %1459 = vmatpush.msra.mxu0 %v349
    %1460 = vmatpush.msra.mxu0 %v345
    %1461 = vmatpush.msra.mxu0 %v341
    %1462 = vmatpush.msra.mxu0 %v337
    %1463 = vmatpush.msra.mxu0 %v333
    %1464 = vmatpush.msra.mxu0 %v329
    %1465 = vmatpush.msra.mxu0 %v325
    %1466 = vmatpush.msra.mxu0 %v321
    %1467 = vmatpush.msra.mxu0 %v317
    %1468 = vmatpush.msra.mxu0 %v313
    %1469 = vmatmul.f32.gmra.mxu0 %v1428
    %v1470 = vpop.f32.mrf.mxu0
    %v1471 = vadd.f32 0.0, %v1470
    %1472 = vdwg.mxu0
    %1473 = vmatpush.msra.mxu0 %v374
    %1474 = vmatpush.msra.mxu0 %v370
    %1475 = vmatpush.msra.mxu0 %v366
    %1476 = vmatpush.msra.mxu0 %v362
    %1477 = vmatpush.msra.mxu0 %v358
    %1478 = vmatpush.msra.mxu0 %v354
    %1479 = vmatpush.msra.mxu0 %v350
    %1480 = vmatpush.msra.mxu0 %v346
    %1481 = vmatpush.msra.mxu0 %v342
    %1482 = vmatpush.msra.mxu0 %v338
    %1483 = vmatpush.msra.mxu0 %v334
    %1484 = vmatpush.msra.mxu0 %v330
    %1485 = vmatpush.msra.mxu0 %v326
    %1486 = vmatpush.msra.mxu0 %v322
    %1487 = vmatpush.msra.mxu0 %v318
    %1488 = vmatpush.msra.mxu0 %v314
    %1489 = vmatmul.f32.gmra.mxu0 %v1428
    %v1490 = vpop.f32.mrf.mxu0
    %v1491 = vadd.f32 0.0, %v1490
    %1492 = vdwg.mxu0
    %1493 = vmatpush.msra.mxu0 %v375
    %1494 = vmatpush.msra.mxu0 %v371
    %1495 = vmatpush.msra.mxu0 %v367
    %1496 = vmatpush.msra.mxu0 %v363
    %1497 = vmatpush.msra.mxu0 %v359
    %1498 = vmatpush.msra.mxu0 %v355
    %1499 = vmatpush.msra.mxu0 %v351
    %1500 = vmatpush.msra.mxu0 %v347
    %1501 = vmatpush.msra.mxu0 %v343
    %1502 = vmatpush.msra.mxu0 %v339
    %1503 = vmatpush.msra.mxu0 %v335
    %1504 = vmatpush.msra.mxu0 %v331
    %1505 = vmatpush.msra.mxu0 %v327
    %1506 = vmatpush.msra.mxu0 %v323
    %1507 = vmatpush.msra.mxu0 %v319
    %1508 = vmatpush.msra.mxu0 %v315
    %1509 = vmatmul.f32.gmra.mxu0 %v1428
    %v1510 = vpop.f32.mrf.mxu0
    %v1511 = vadd.f32 0.0, %v1510
    %1512 = vdwg.mxu0
    %v1513 = vadd.f32 %v1429, %v1451
    %v1514 = vadd.f32 %v1430, %v1471
    %v1515 = vadd.f32 %v1431, %v1491
    %v1516 = vadd.f32 %v1432, %v1511
    %v1517 = vxor.u32 %v1513, 2147483648
    %v1518 = vxor.u32 %v1514, 2147483648
    %v1519 = vxor.u32 %v1515, 2147483648
    %v1520 = vmul.f32 %v1517, 1.442695
    %v1521 = vpow.pop %v1520
    %v1522 = vmul.f32 %v1518, 1.442695
    %v1523 = vpow.pop %v1522
    %v1524 = vmul.f32 %v1519, 1.442695
    %v1525 = vpow.pop %v1524
    %v1526 = vadd.f32 %v1521, 1.0
    %v1527 = vadd.f32 %v1523, 1.0
    %v1528 = vadd.f32 %v1525, 1.0
    %v1529 = vrcp.pop %v1526
    %v1530 = vmul.f32 %v1526, %v1529
    %v1531 = vsub.f32 1.0, %v1530
    %v1532 = vmul.f32 %v1529, %v1531
    %v1533 = vadd.f32 %v1529, %v1532
    %vm1534 = vweird.f32 %v1526
    %vm1535 = vweird.f32 %v1529
    %vm1536 = vmor %vm1534, %vm1535
    %v1537 = vsel %vm1536, %v1529, %v1533
    %v1538 = vand.u32 2147483647, %v1526
    %vm1539 = vcmp.eq.f32.partialorder %v1538, 8.507059e+37
    %v1540 = vand.u32 %v1526, 2147483648
    %v1541 = vor.u32 1.1754944e-38, %v1540
    %v1542 = vsel %vm1539, %v1541, %v1537
    %v1543 = vmul.f32 1.0, %v1542
    %v1544 = vrcp.pop %v1527
    %v1545 = vmul.f32 %v1527, %v1544
    %v1546 = vsub.f32 1.0, %v1545
    %v1547 = vmul.f32 %v1544, %v1546
    %v1548 = vadd.f32 %v1544, %v1547
    %vm1549 = vweird.f32 %v1527
    %vm1550 = vweird.f32 %v1544
    %vm1551 = vmor %vm1549, %vm1550
    %v1552 = vsel %vm1551, %v1544, %v1548
    %v1553 = vand.u32 2147483647, %v1527
    %vm1554 = vcmp.eq.f32.partialorder %v1553, 8.507059e+37
    %v1555 = vand.u32 %v1527, 2147483648
    %v1556 = vor.u32 1.1754944e-38, %v1555
    %v1557 = vsel %vm1554, %v1556, %v1552
    %v1558 = vmul.f32 1.0, %v1557
    %v1559 = vrcp.pop %v1528
    %v1560 = vmul.f32 %v1528, %v1559
    %v1561 = vsub.f32 1.0, %v1560
    %v1562 = vmul.f32 %v1559, %v1561
    %v1563 = vadd.f32 %v1559, %v1562
    %vm1564 = vweird.f32 %v1528
    %vm1565 = vweird.f32 %v1559
    %vm1566 = vmor %vm1564, %vm1565
    %v1567 = vsel %vm1566, %v1559, %v1563
    %v1568 = vand.u32 2147483647, %v1528
    %vm1569 = vcmp.eq.f32.partialorder %v1568, 8.507059e+37
    %v1570 = vand.u32 %v1528, 2147483648
    %v1571 = vor.u32 1.1754944e-38, %v1570
    %v1572 = vsel %vm1569, %v1571, %v1567
    %v1573 = vmul.f32 1.0, %v1572
    %v1574 = vtanh.pop %v1516
    %v1575 = vmul.f32 %v1558, %v1426
    %v1576 = vmul.f32 %v1543, %v1574
    %v1577 = vadd.f32 %v1575, %v1576
    %v1578 = vtanh.pop %v1577
    %v1579 = vmul.f32 %v1573, %v1578
    %v1580 = vld [vmem:[%s4] sm:$0xff]
    %v1581 = vld [vmem:[%s4 + $0x8] sm:$0xff]
    %v1582 = vld [vmem:[%s4 + $0x10] sm:$0xff]
    %v1583 = vld [vmem:[%s4 + $0x18] sm:$0xff]
    %v1584 = vld [vmem:[%s4 + $0x20] sm:$0xff]
    %v1585 = vld [vmem:[%s4 + $0x28] sm:$0xff]
    %v1586 = vld [vmem:[%s4 + $0x30] sm:$0xff]
    %v1587 = vld [vmem:[%s4 + $0x38] sm:$0xff]
    %v1588 = vld [vmem:[%s4 + $0x40] sm:$0xff]
    %v1589 = vld [vmem:[%s4 + $0x48] sm:$0xff]
    %v1590 = vld [vmem:[%s4 + $0x50] sm:$0xff]
    %v1591 = vld [vmem:[%s4 + $0x58] sm:$0xff]
    %v1592 = vld [vmem:[%s4 + $0x60] sm:$0xff]
    %v1593 = vld [vmem:[%s4 + $0x68] sm:$0xff]
    %v1594 = vld [vmem:[%s4 + $0x70] sm:$0xff]
    %v1595 = vld [vmem:[%s4 + $0x78] sm:$0xff]
    %v1596 = vld [vmem:[#allocation5] sm:$0x1]
    %v1598 = vperm.slane %v1596, 0
    %1600 = vmatpush.msra.mxu0 %v1595
    %1601 = vmatpush.msra.mxu0 %v1594
    %1602 = vmatpush.msra.mxu0 %v1593
    %1603 = vmatpush.msra.mxu0 %v1592
    %1604 = vmatpush.msra.mxu0 %v1591
    %1605 = vmatpush.msra.mxu0 %v1590
    %1606 = vmatpush.msra.mxu0 %v1589
    %1607 = vmatpush.msra.mxu0 %v1588
    %1608 = vmatpush.msra.mxu0 %v1587
    %1609 = vmatpush.msra.mxu0 %v1586
    %1610 = vmatpush.msra.mxu0 %v1585
    %1611 = vmatpush.msra.mxu0 %v1584
    %1612 = vmatpush.msra.mxu0 %v1583
    %1613 = vmatpush.msra.mxu0 %v1582
    %1614 = vmatpush.msra.mxu0 %v1581
    %1615 = vmatpush.msra.mxu0 %v1580
    %1616 = vmatmul.f32.gmra.mxu0 %v1579
    %v1617 = vpop.f32.mrf.mxu0
    %v1618 = vadd.f32 %v1598, %v1617
    %1619 = vdwg.mxu0
    %1620 = vst [vmem:[%s6] sm:$0xff] %v1618
    // Predicated region
    $region34: #{decoder_forward.1} parent=1 // pred_check
      _
    $region35: #{decoder_forward.1} parent=1 // pred_check_branch
      %1622 = sbr.rel (0) target = $region37
    $region36: #{decoder_forward.1} parent=1 // pred_region
      _
    $region37: #{decoder_forward.1} parent=1 // pred_fallthru
      _
    // Predicated region
    $region38: #{decoder_forward.1} parent=1 // pred_check
      _
    $region39: #{decoder_forward.1} parent=1 // pred_check_branch
      %1624 = sbr.rel (0) target = $region41
    $region40: #{decoder_forward.1} parent=1 // pred_region
      _
    $region41: #{decoder_forward.1} parent=1 // pred_fallthru
      _
    %1625 = vsyncpa [#allocation4], 1
    %1626 = vsyncpa [#allocation6], 1

</llo_original>
